<compile_context>
chip_gen: v6e
topology: v6e:2x2x1
jax: 0.10.0
libtpu: 0.0.40
codegen_flags: <defaults>
</compile_context>

<pallas_src>
import math

import jax
import jax.numpy as jnp
from jax.experimental import pallas as pl
from jax.experimental.pallas import tpu as pltpu

SMEM = pltpu.MemorySpace.SMEM


def _round_up(x, m):
    return ((x + m - 1) // m) * m


def _nbytes(shape, dtype):
    return math.prod(shape) * jnp.dtype(dtype).itemsize


# -----------------------------------------------------------------------------
# Fused forward kernel (one grid step == one GIN + virtual-node layer;
# the last step also does mean pooling + the prediction head).
# -----------------------------------------------------------------------------
def _gnn_fused_kernel(h0_ref, p_ref, pt_ref, invc_ref,
                      ssrc_ref, sdstt_ref, eemb_ref,
                      w1_ref, c1_ref, w2_ref, c2_ref,
                      vw1_ref, vc1_ref, vw2_ref, vc2_ref,
                      wg_ref, bg_ref, eps_ref,
                      out_ref,
                      h_s, vn_s):
    l = pl.program_id(0)
    nl = pl.num_programs(0)

    @pl.when(l == 0)
    def _init():
        h_s[...] = h0_ref[...]
        vn_s[...] = jnp.zeros_like(vn_s)     # virtual node init == 0

    eps_l = eps_ref[l]

    # Virtual-node broadcast: hvn = h + P @ vn   (bf16 MXU, f32 accumulate).
    hvn = h_s[...] + jnp.dot(p_ref[...], vn_s[...].astype(jnp.bfloat16),
                             preferred_element_type=jnp.float32)
    hvn_bf = hvn.astype(jnp.bfloat16)        # hoisted: reused by gather + pool

    # Vectorized GIN aggregation (MXU incidence matmuls, no serial scatter):
    #   gathered[e] = hvn[src[e]],  agg[n] = sum_{e: dst[e]==n} msg[e]
    gathered = jnp.dot(ssrc_ref[...], hvn_bf,
                       preferred_element_type=jnp.float32)
    msg = jnp.maximum(gathered + eemb_ref[...], 0.0)
    agg = jnp.dot(sdstt_ref[...], msg.astype(jnp.bfloat16),
                  preferred_element_type=jnp.float32)

    # GIN update + MLP (bias & eval-mode BatchNorm folded into W / c).
    z = (1.0 + eps_l) * hvn + agg
    t = jnp.maximum(jnp.dot(z.astype(jnp.bfloat16), w1_ref[...],
                            preferred_element_type=jnp.float32) + c1_ref[...],
                    0.0)
    o = jnp.dot(t.astype(jnp.bfloat16), w2_ref[...],
                preferred_element_type=jnp.float32) + c2_ref[...]

    # All-but-last layer: inter-layer ReLU (dropout == identity in eval) and
    # virtual-node update vn = ReLU(MLP(add_pool(hvn) + vn)).  Merged into a
    # single predicated region; pooled (B, D) tensor never leaves VMEM.
    @pl.when(l != nl - 1)
    def _not_last():
        h_s[...] = jnp.maximum(o, 0.0)
        pooled = jnp.dot(pt_ref[...], hvn_bf,
                         preferred_element_type=jnp.float32) + vn_s[...]
        vt = jnp.maximum(jnp.dot(pooled.astype(jnp.bfloat16), vw1_ref[...],
                                 preferred_element_type=jnp.float32)
                         + vc1_ref[...], 0.0)
        vv = jnp.dot(vt.astype(jnp.bfloat16), vw2_ref[...],
                     preferred_element_type=jnp.float32) + vc2_ref[...]
        vn_s[...] = jnp.maximum(vv, 0.0)

    # Last step: global mean pool + graph prediction head (lane-dense output).
    @pl.when(l == nl - 1)
    def _finalize():
        hg = jnp.dot(pt_ref[...], o.astype(jnp.bfloat16),
                     preferred_element_type=jnp.float32) * invc_ref[...]
        out_ref[...] = jnp.dot(hg.astype(jnp.bfloat16), wg_ref[...],
                               preferred_element_type=jnp.float32) + bg_ref[...]


def gnn_forward(h0_p, P_p, Pt_p, invc, Ssrc_p, SdstT_p, eemb_all,
                w1_all, c1_all, w2_all, c2_all,
                vw1_all, vc1_all, vw2_all, vc2_all, wg_p, bg_p, eps):
    L = eemb_all.shape[0]
    N_pad, D_pad = h0_p.shape
    B_pad = Pt_p.shape[0]
    E_pad = eemb_all.shape[1]
    H_pad = w1_all.shape[2]
    C_pad = wg_p.shape[1]

    def const_spec(shape):
        zeros = (0,) * len(shape)
        return pl.BlockSpec(shape, lambda l, _z=zeros: _z)

    def layer_spec(shape):
        return pl.BlockSpec((None,) + shape, lambda l: (l, 0, 0))

    def vn_spec(shape):
        last = L - 2
        return pl.BlockSpec((None,) + shape,
                            lambda l, _m=last: (jnp.minimum(l, _m), 0, 0))

    in_specs = [
        const_spec((N_pad, D_pad)),       # h0
        const_spec((N_pad, B_pad)),       # P  (node -> graph one-hot, bf16)
        const_spec((B_pad, N_pad)),       # P^T (bf16)
        const_spec((B_pad, 1)),           # 1 / nodes-per-graph (mean pool)
        const_spec((E_pad, N_pad)),       # src incidence one-hot (bf16)
        const_spec((N_pad, E_pad)),       # dst incidence one-hot^T (bf16)
        layer_spec((E_pad, D_pad)),       # per-layer bond embeddings (bf16)
        layer_spec((D_pad, H_pad)),       # GIN MLP W1 (BN folded, bf16)
        layer_spec((1, H_pad)),           # GIN MLP shift1
        layer_spec((H_pad, D_pad)),       # GIN MLP W2 (outer BN folded, bf16)
        layer_spec((1, D_pad)),           # GIN MLP shift2
        vn_spec((D_pad, H_pad)),          # VN MLP W1 (bf16)
        vn_spec((1, H_pad)),              # VN MLP shift1
        vn_spec((H_pad, D_pad)),          # VN MLP W2 (bf16)
        vn_spec((1, D_pad)),              # VN MLP shift2
        const_spec((D_pad, C_pad)),       # graph_pred_linear W (bf16)
        const_spec((1, C_pad)),           # graph_pred_linear b
        pl.BlockSpec(memory_space=SMEM),  # eps  (L,)
    ]

    # Explicit VMEM budget: resident scratch + (double-buffered) streamed
    # blocks + constants, with 2x headroom; clipped below the physical caps
    # (re-derive per generation: v7x has only 64 MiB of VMEM).
    const_bytes = (_nbytes((N_pad, D_pad), jnp.float32)
                   + _nbytes((N_pad, B_pad), jnp.bfloat16)
                   + _nbytes((B_pad, N_pad), jnp.bfloat16)
                   + _nbytes((B_pad, 1), jnp.float32)
                   + _nbytes((E_pad, N_pad), jnp.bfloat16)
                   + _nbytes((N_pad, E_pad), jnp.bfloat16)
                   + _nbytes((D_pad, C_pad), jnp.bfloat16)
                   + _nbytes((1, C_pad), jnp.float32)
                   + _nbytes((B_pad, C_pad), jnp.float32))
    layer_bytes = (_nbytes((E_pad, D_pad), jnp.bfloat16)
                   + 2 * _nbytes((D_pad, H_pad), jnp.bfloat16)
                   + 2 * _nbytes((H_pad, D_pad), jnp.bfloat16)
                   + 2 * _nbytes((1, H_pad), jnp.float32)
                   + 2 * _nbytes((1, D_pad), jnp.float32))
    scratch_bytes = (_nbytes((N_pad, D_pad), jnp.float32)
                     + _nbytes((B_pad, D_pad), jnp.float32))
    vmem_est = 2 * (const_bytes + layer_bytes) + scratch_bytes
    vmem_limit = int(min(96 * 2**20, max(8 * 2**20, 2 * vmem_est)))

    return pl.pallas_call(
        _gnn_fused_kernel,
        grid=(L,),
        in_specs=in_specs,
        out_specs=const_spec((B_pad, C_pad)),
        out_shape=jax.ShapeDtypeStruct((B_pad, C_pad), jnp.float32),
        scratch_shapes=[
            pltpu.VMEM((N_pad, D_pad), jnp.float32),   # h (layer-resident)
            pltpu.VMEM((B_pad, D_pad), jnp.float32),   # virtual node
        ],
        compiler_params=pltpu.CompilerParams(
            dimension_semantics=("arbitrary",),
            vmem_limit_bytes=vmem_limit),
    )(h0_p, P_p, Pt_p, invc, Ssrc_p, SdstT_p, eemb_all,
      w1_all, c1_all, w2_all, c2_all,
      vw1_all, vc1_all, vw2_all, vc2_all, wg_p, bg_p, eps)


# -----------------------------------------------------------------------------
# Deterministic parameter helpers + host-side glue
# -----------------------------------------------------------------------------
_BASE_KEY = jax.random.PRNGKey(0)
_CTR = [0]


def nk():
    _CTR[0] += 1
    return jax.random.fold_in(_BASE_KEY, _CTR[0])


def linear_init(in_dim, out_dim):
    bound = float(in_dim) ** -0.5
    w = jax.random.uniform(nk(), (in_dim, out_dim), jnp.float32, -bound, bound)
    b = jax.random.uniform(nk(), (out_dim,), jnp.float32, -bound, bound)
    return w, b


def bn_fold(dim, eps=1e-5):
    # fresh BatchNorm1d in eval mode: gamma=1, beta=0, mean=0, var=1
    gamma = jnp.ones((dim,), jnp.float32)
    beta = jnp.zeros((dim,), jnp.float32)
    mean = jnp.zeros((dim,), jnp.float32)
    var = jnp.ones((dim,), jnp.float32)
    scale = gamma / jnp.sqrt(var + eps)
    shift = beta - mean * scale
    return scale, shift


def pad2(x, rows, cols, dtype=None):
    dt = x.dtype if dtype is None else dtype
    out = jnp.zeros((rows, cols), dt)
    return out.at[:x.shape[0], :x.shape[1]].set(x.astype(dt))


def reference_forward(h0, batch, src, dst, edge_embs, eps_list,
                      W1f, c1f, W2f, c2f, VW1f, vc1f, VW2f, vc2f,
                      wg, bg, counts):
    num_layer = len(W1f)
    n_graph = counts.shape[0]
    h = h0
    vn = jnp.zeros((n_graph, h0.shape[1]), jnp.float32)
    for l in range(num_layer):
        hvn = h + vn[batch]
        msg = jnp.maximum(hvn[src] + edge_embs[l], 0.0)
        agg = jnp.zeros_like(h).at[dst].add(msg)
        z = (1.0 + eps_list[l]) * hvn + agg
        t = jnp.maximum(z @ W1f[l] + c1f[l], 0.0)
        o = t @ W2f[l] + c2f[l]
        h = o if l == num_layer - 1 else jnp.maximum(o, 0.0)
        if l < num_layer - 1:
            pooled = jnp.zeros_like(vn).at[batch].add(hvn) + vn
            vt = jnp.maximum(pooled @ VW1f[l] + vc1f[l], 0.0)
            vn = jnp.maximum(vt @ VW2f[l] + vc2f[l], 0.0)
    hg = jnp.zeros_like(vn).at[batch].add(h) / counts[:, None]
    return hg @ wg + bg


if __name__ == "__main__":
    # ---- small config consistent with the module ----
    num_layer = 5
    emb_dim = 32          # module default is 300; small for the example
    num_class = 4
    B = 2                 # graphs in the batch
    nodes_per_graph = 8
    N = B * nodes_per_graph
    E = 32                # directed edges
    num_atom_feat, atom_vocab = 9, 8
    num_bond_feat, bond_vocab = 3, 4

    # padded sizes: lane dims -> multiples of 128, sublane dims -> multiples of 8
    D_pad = _round_up(emb_dim, 128)
    H_pad = _round_up(2 * emb_dim, 128)
    C_pad = _round_up(num_class, 128)
    N_pad = _round_up(N, 8)
    B_pad = _round_up(B, 8)
    E_pad = _round_up(E, 8)

    # ---- synthetic batched graph (glue) ----
    x_int = jax.random.randint(nk(), (N, num_atom_feat), 0, atom_vocab)
    edge_attr = jax.random.randint(nk(), (E, num_bond_feat), 0, bond_vocab)
    batch = jnp.repeat(jnp.arange(B), nodes_per_graph)
    e_per_g = E // B
    src = jnp.concatenate([
        jax.random.randint(nk(), (e_per_g,), g * nodes_per_graph,
                           (g + 1) * nodes_per_graph) for g in range(B)])
    dst = jnp.concatenate([
        jax.random.randint(nk(), (e_per_g,), g * nodes_per_graph,
                           (g + 1) * nodes_per_graph) for g in range(B)])
    src = src.astype(jnp.int32)
    dst = dst.astype(jnp.int32)

    # graph-membership one-hots (exact 0/1 in bf16) + mean-pool scale
    P = jax.nn.one_hot(batch, B, dtype=jnp.float32)            # (N, B)
    counts = P.sum(axis=0)                                     # (B,)
    P_p = pad2(P, N_pad, B_pad, jnp.bfloat16)
    Pt_p = pad2(P.T, B_pad, N_pad, jnp.bfloat16)
    invc = jnp.zeros((B_pad, 1), jnp.float32).at[:B, 0].set(1.0 / counts)

    # edge incidence one-hots for the MXU gather/scatter (padded rows/cols are
    # all-zero, so padded edges contribute nothing)
    Ssrc = jax.nn.one_hot(src, N, dtype=jnp.float32)           # (E, N)
    Sdst = jax.nn.one_hot(dst, N, dtype=jnp.float32)           # (E, N)
    Ssrc_p = pad2(Ssrc, E_pad, N_pad, jnp.bfloat16)
    SdstT_p = pad2(Sdst.T, N_pad, E_pad, jnp.bfloat16)

    # AtomEncoder: sum of 9 embedding lookups (integer gather = glue, host side)
    atom_tables = [0.1 * jax.random.normal(nk(), (atom_vocab, emb_dim), jnp.float32)
                   for _ in range(num_atom_feat)]
    h0 = sum(tbl[x_int[:, i]] for i, tbl in enumerate(atom_tables))   # (N, D)
    h0_p = pad2(h0, N_pad, D_pad)

    # ---- per-layer params: fold bias + eval-mode BatchNorm into W / shift ----
    edge_embs, W1f, c1f, W2f, c2f = [], [], [], [], []
    VW1f, vc1f, VW2f, vc2f = [], [], [], []
    for _ in range(num_layer):
        bond_tables = [0.1 * jax.random.normal(nk(), (bond_vocab, emb_dim), jnp.float32)
                       for _ in range(num_bond_feat)]
        edge_embs.append(sum(tbl[edge_attr[:, i]]
                             for i, tbl in enumerate(bond_tables)))    # (E, D)
        w1, b1 = linear_init(emb_dim, 2 * emb_dim)
        s1, t1 = bn_fold(2 * emb_dim)
        w2, b2 = linear_init(2 * emb_dim, emb_dim)
        so, to = bn_fold(emb_dim)          # the conv-output BatchNorm
        W1f.append(w1 * s1[None, :]); c1f.append(b1 * s1 + t1)
        W2f.append(w2 * so[None, :]); c2f.append(b2 * so + to)
    for _ in range(num_layer - 1):
        vw1, vb1 = linear_init(emb_dim, 2 * emb_dim)
        vs1, vt1 = bn_fold(2 * emb_dim)
        vw2, vb2 = linear_init(2 * emb_dim, emb_dim)
        vs2, vt2 = bn_fold(emb_dim)
        VW1f.append(vw1 * vs1[None, :]); vc1f.append(vb1 * vs1 + vt1)
        VW2f.append(vw2 * vs2[None, :]); vc2f.append(vb2 * vs2 + vt2)
    wg, bg = linear_init(emb_dim, num_class)     # graph_pred_linear
    # GIN eps is a learnable parameter (init 0 in PyTorch); use nonzero values
    # here so the (1 + eps) path is actually exercised by the test.
    eps = jnp.linspace(0.05, 0.25, num_layer).astype(jnp.float32)

    # ---- padded / bf16 kernel operands (stacked along the layer axis) ----
    eemb_all = jnp.stack([pad2(e, E_pad, D_pad, jnp.bfloat16) for e in edge_embs])
    w1_all = jnp.stack([pad2(w, D_pad, H_pad, jnp.bfloat16) for w in W1f])
    c1_all = jnp.stack([pad2(c[None, :], 1, H_pad) for c in c1f])
    w2_all = jnp.stack([pad2(w, H_pad, D_pad, jnp.bfloat16) for w in W2f])
    c2_all = jnp.stack([pad2(c[None, :], 1, D_pad) for c in c2f])
    vw1_all = jnp.stack([pad2(w, D_pad, H_pad, jnp.bfloat16) for w in VW1f])
    vc1_all = jnp.stack([pad2(c[None, :], 1, H_pad) for c in vc1f])
    vw2_all = jnp.stack([pad2(w, H_pad, D_pad, jnp.bfloat16) for w in VW2f])
    vc2_all = jnp.stack([pad2(c[None, :], 1, D_pad) for c in vc2f])
    wg_p = pad2(wg, D_pad, C_pad, jnp.bfloat16)
    bg_p = pad2(bg[None, :], 1, C_pad)

    out_full = gnn_forward(h0_p, P_p, Pt_p, invc, Ssrc_p, SdstT_p, eemb_all,
                           w1_all, c1_all, w2_all, c2_all,
                           vw1_all, vc1_all, vw2_all, vc2_all,
                           wg_p, bg_p, eps)
    out_full = jax.block_until_ready(out_full)
    out = out_full[:B, :num_class]

    # f32 reference with the same folded params (bf16-MXU tolerance)
    ref = reference_forward(h0, batch, src, dst, edge_embs,
                            [float(e) for e in eps], W1f, c1f, W2f, c2f,
                            VW1f, vc1f, VW2f, vc2f, wg, bg, counts)
    assert out.shape == (B, num_class)
    assert float(jnp.max(jnp.abs(out - ref))) < 3e-2
    print("KERNEL_OK")
</pallas_src>

<mosaic_0001>
module attributes {stable_mosaic.version = 11 : i64} {
  func.func @_gnn_fused_kernel(%arg0: i32, %arg1: memref<16x128xf32, #tpu.memory_space<vmem>>, %arg2: memref<16x8xbf16, #tpu.memory_space<vmem>>, %arg3: memref<8x16xbf16, #tpu.memory_space<vmem>>, %arg4: memref<8x1xf32, #tpu.memory_space<vmem>>, %arg5: memref<32x16xbf16, #tpu.memory_space<vmem>>, %arg6: memref<16x32xbf16, #tpu.memory_space<vmem>>, %arg7: memref<1x32x128xbf16, #tpu.memory_space<vmem>>, %arg8: memref<1x128x128xbf16, #tpu.memory_space<vmem>>, %arg9: memref<1x1x128xf32, #tpu.memory_space<vmem>>, %arg10: memref<1x128x128xbf16, #tpu.memory_space<vmem>>, %arg11: memref<1x1x128xf32, #tpu.memory_space<vmem>>, %arg12: memref<1x128x128xbf16, #tpu.memory_space<vmem>>, %arg13: memref<1x1x128xf32, #tpu.memory_space<vmem>>, %arg14: memref<1x128x128xbf16, #tpu.memory_space<vmem>>, %arg15: memref<1x1x128xf32, #tpu.memory_space<vmem>>, %arg16: memref<128x128xbf16, #tpu.memory_space<vmem>>, %arg17: memref<1x128xf32, #tpu.memory_space<vmem>>, %arg18: memref<5xf32, #tpu.memory_space<smem>>, %arg19: memref<8x128xf32, #tpu.memory_space<vmem>>, %arg20: memref<16x128xf32, #tpu.memory_space<vmem>>, %arg21: memref<8x128xf32, #tpu.memory_space<vmem>>) attributes {dimension_semantics = [#tpu.dimension_semantics<arbitrary>], iteration_bounds = array<i64: 5>, scalar_prefetch = 0 : i64, scratch_operands = 2 : i64, tpu.core_type = #tpu.core_type<tc>, window_params = [{pipeline_mode = #tpu.pipeline_mode<synchronous>, transform_indices = @transform_0, window_bounds = array<i64: 16, 128>}, {pipeline_mode = #tpu.pipeline_mode<synchronous>, transform_indices = @transform_1, window_bounds = array<i64: 16, 8>}, {pipeline_mode = #tpu.pipeline_mode<synchronous>, transform_indices = @transform_2, window_bounds = array<i64: 8, 16>}, {pipeline_mode = #tpu.pipeline_mode<synchronous>, transform_indices = @transform_3, window_bounds = array<i64: 8, 1>}, {pipeline_mode = #tpu.pipeline_mode<synchronous>, transform_indices = @transform_4, window_bounds = array<i64: 32, 16>}, {pipeline_mode = #tpu.pipeline_mode<synchronous>, transform_indices = @transform_5, window_bounds = array<i64: 16, 32>}, {transform_indices = @transform_6, window_bounds = array<i64: 1, 32, 128>}, {transform_indices = @transform_7, window_bounds = array<i64: 1, 128, 128>}, {transform_indices = @transform_8, window_bounds = array<i64: 1, 1, 128>}, {transform_indices = @transform_9, window_bounds = array<i64: 1, 128, 128>}, {transform_indices = @transform_10, window_bounds = array<i64: 1, 1, 128>}, {transform_indices = @transform_11, window_bounds = array<i64: 1, 128, 128>}, {transform_indices = @transform_12, window_bounds = array<i64: 1, 1, 128>}, {transform_indices = @transform_13, window_bounds = array<i64: 1, 128, 128>}, {transform_indices = @transform_14, window_bounds = array<i64: 1, 1, 128>}, {pipeline_mode = #tpu.pipeline_mode<synchronous>, transform_indices = @transform_15, window_bounds = array<i64: 128, 128>}, {pipeline_mode = #tpu.pipeline_mode<synchronous>, transform_indices = @transform_16, window_bounds = array<i64: 1, 128>}, {transform_indices = @transform_17, window_bounds = array<i64: 5>}, {pipeline_mode = #tpu.pipeline_mode<synchronous>, transform_indices = @transform_18, window_bounds = array<i64: 8, 128>}]} {
    %c0_i32 = arith.constant 0 : i32
    %0 = arith.cmpi eq, %arg0, %c0_i32 : i32
    %1 = arith.extui %0 : i1 to i32
    %c0_i32_0 = arith.constant 0 : i32
    %2 = arith.cmpi ne, %1, %c0_i32_0 : i32
    scf.if %2 {
      %c0_35 = arith.constant 0 : index
      %c0_36 = arith.constant 0 : index
      %51 = vector.load %arg1[%c0_35, %c0_36] : memref<16x128xf32, #tpu.memory_space<vmem>>, vector<16x128xf32>
      %c0_37 = arith.constant 0 : index
      %c0_38 = arith.constant 0 : index
      %52 = vector.load %arg20[%c0_37, %c0_38] : memref<16x128xf32, #tpu.memory_space<vmem>>, vector<16x128xf32>
      tpu.vector_store %arg20[%c0_37, %c0_38], %51 {strides = array<i32>} : memref<16x128xf32, #tpu.memory_space<vmem>>, vector<16x128xf32>,
      %cst_39 = arith.constant 0.000000e+00 : f32
      %53 = vector.broadcast %cst_39 : f32 to vector<8x128xf32>
      %c0_40 = arith.constant 0 : index
      %c0_41 = arith.constant 0 : index
      %54 = vector.load %arg21[%c0_40, %c0_41] : memref<8x128xf32, #tpu.memory_space<vmem>>, vector<8x128xf32>
      tpu.vector_store %arg21[%c0_40, %c0_41], %53 {strides = array<i32>} : memref<8x128xf32, #tpu.memory_space<vmem>>, vector<8x128xf32>,
    } else {
    }
    %3 = arith.index_cast %arg0 : i32 to index
    %4 = memref.load %arg18[%3] : memref<5xf32, #tpu.memory_space<smem>>
    %c0 = arith.constant 0 : index
    %c0_1 = arith.constant 0 : index
    %5 = vector.load %arg20[%c0, %c0_1] : memref<16x128xf32, #tpu.memory_space<vmem>>, vector<16x128xf32>
    %c0_2 = arith.constant 0 : index
    %c0_3 = arith.constant 0 : index
    %6 = vector.load %arg2[%c0_2, %c0_3] : memref<16x8xbf16, #tpu.memory_space<vmem>>, vector<16x8xbf16>
    %c0_4 = arith.constant 0 : index
    %c0_5 = arith.constant 0 : index
    %7 = vector.load %arg21[%c0_4, %c0_5] : memref<8x128xf32, #tpu.memory_space<vmem>>, vector<8x128xf32>
    %8 = arith.truncf %7 : vector<8x128xf32> to vector<8x128xbf16>
    %cst = arith.constant dense<0.000000e+00> : vector<16x128xf32>
    %9 = tpu.matmul %6, %8, %cst {dimension_numbers = #tpu.dot_dimension_numbers<[1], [0], [0], [1], [0, 0, 1, 1], [], []>} : vector<16x8xbf16>, vector<8x128xbf16>, vector<16x128xf32> -> vector<16x128xf32>
    %10 = arith.addf %5, %9 : vector<16x128xf32>
    %11 = arith.truncf %10 : vector<16x128xf32> to vector<16x128xbf16>
    %c0_6 = arith.constant 0 : index
    %c0_7 = arith.constant 0 : index
    %12 = vector.load %arg5[%c0_6, %c0_7] : memref<32x16xbf16, #tpu.memory_space<vmem>>, vector<32x16xbf16>
    %cst_8 = arith.constant dense<0.000000e+00> : vector<32x128xf32>
    %13 = tpu.matmul %12, %11, %cst_8 {dimension_numbers = #tpu.dot_dimension_numbers<[1], [0], [0], [1], [0, 0, 1, 1], [], []>} : vector<32x16xbf16>, vector<16x128xbf16>, vector<32x128xf32> -> vector<32x128xf32>
    %c0_9 = arith.constant 0 : index
    %c0_10 = arith.constant 0 : index
    %c0_11 = arith.constant 0 : index
    %14 = vector.load %arg7[%c0_9, %c0_10, %c0_11] : memref<1x32x128xbf16, #tpu.memory_space<vmem>>, vector<1x32x128xbf16>
    %15 = vector.shape_cast %14 : vector<1x32x128xbf16> to vector<32x128xbf16>
    %16 = arith.extf %15 : vector<32x128xbf16> to vector<32x128xf32>
    %17 = arith.addf %13, %16 : vector<32x128xf32>
    %cst_12 = arith.constant 0.000000e+00 : f32
    %18 = vector.broadcast %cst_12 : f32 to vector<32x128xf32>
    %19 = arith.maximumf %17, %18 : vector<32x128xf32>
    %c0_13 = arith.constant 0 : index
    %c0_14 = arith.constant 0 : index
    %20 = vector.load %arg6[%c0_13, %c0_14] : memref<16x32xbf16, #tpu.memory_space<vmem>>, vector<16x32xbf16>
    %21 = arith.truncf %19 : vector<32x128xf32> to vector<32x128xbf16>
    %cst_15 = arith.constant dense<0.000000e+00> : vector<16x128xf32>
    %22 = tpu.matmul %20, %21, %cst_15 {dimension_numbers = #tpu.dot_dimension_numbers<[1], [0], [0], [1], [0, 0, 1, 1], [], []>} : vector<16x32xbf16>, vector<32x128xbf16>, vector<16x128xf32> -> vector<16x128xf32>
    %cst_16 = arith.constant 1.000000e+00 : f32
    %23 = arith.addf %cst_16, %4 : f32
    %24 = vector.broadcast %23 : f32 to vector<16x128xf32>
    %25 = arith.mulf %24, %10 : vector<16x128xf32>
    %26 = arith.addf %25, %22 : vector<16x128xf32>
    %27 = arith.truncf %26 : vector<16x128xf32> to vector<16x128xbf16>
    %c0_17 = arith.constant 0 : index
    %c0_18 = arith.constant 0 : index
    %c0_19 = arith.constant 0 : index
    %28 = vector.load %arg8[%c0_17, %c0_18, %c0_19] : memref<1x128x128xbf16, #tpu.memory_space<vmem>>, vector<1x128x128xbf16>
    %29 = vector.shape_cast %28 : vector<1x128x128xbf16> to vector<128x128xbf16>
    %cst_20 = arith.constant dense<0.000000e+00> : vector<16x128xf32>
    %30 = tpu.matmul %27, %29, %cst_20 {dimension_numbers = #tpu.dot_dimension_numbers<[1], [0], [0], [1], [0, 0, 1, 1], [], []>} : vector<16x128xbf16>, vector<128x128xbf16>, vector<16x128xf32> -> vector<16x128xf32>
    %c0_21 = arith.constant 0 : index
    %c0_22 = arith.constant 0 : index
    %c0_23 = arith.constant 0 : index
    %31 = vector.load %arg9[%c0_21, %c0_22, %c0_23] : memref<1x1x128xf32, #tpu.memory_space<vmem>>, vector<1x1x128xf32>
    %32 = vector.shape_cast %31 : vector<1x1x128xf32> to vector<1x128xf32>
    %33 = vector.broadcast %32 : vector<1x128xf32> to vector<16x128xf32>
    %34 = arith.addf %30, %33 : vector<16x128xf32>
    %cst_24 = arith.constant 0.000000e+00 : f32
    %35 = vector.broadcast %cst_24 : f32 to vector<16x128xf32>
    %36 = arith.maximumf %34, %35 : vector<16x128xf32>
    %37 = arith.truncf %36 : vector<16x128xf32> to vector<16x128xbf16>
    %c0_25 = arith.constant 0 : index
    %c0_26 = arith.constant 0 : index
    %c0_27 = arith.constant 0 : index
    %38 = vector.load %arg10[%c0_25, %c0_26, %c0_27] : memref<1x128x128xbf16, #tpu.memory_space<vmem>>, vector<1x128x128xbf16>
    %39 = vector.shape_cast %38 : vector<1x128x128xbf16> to vector<128x128xbf16>
    %cst_28 = arith.constant dense<0.000000e+00> : vector<16x128xf32>
    %40 = tpu.matmul %37, %39, %cst_28 {dimension_numbers = #tpu.dot_dimension_numbers<[1], [0], [0], [1], [0, 0, 1, 1], [], []>} : vector<16x128xbf16>, vector<128x128xbf16>, vector<16x128xf32> -> vector<16x128xf32>
    %c0_29 = arith.constant 0 : index
    %c0_30 = arith.constant 0 : index
    %c0_31 = arith.constant 0 : index
    %41 = vector.load %arg11[%c0_29, %c0_30, %c0_31] : memref<1x1x128xf32, #tpu.memory_space<vmem>>, vector<1x1x128xf32>
    %42 = vector.shape_cast %41 : vector<1x1x128xf32> to vector<1x128xf32>
    %43 = vector.broadcast %42 : vector<1x128xf32> to vector<16x128xf32>
    %44 = arith.addf %40, %43 : vector<16x128xf32>
    %c4_i32 = arith.constant 4 : i32
    %45 = arith.cmpi ne, %arg0, %c4_i32 : i32
    %46 = arith.extui %45 : i1 to i32
    %c0_i32_32 = arith.constant 0 : i32
    %47 = arith.cmpi ne, %46, %c0_i32_32 : i32
    scf.if %47 {
      %cst_35 = arith.constant 0.000000e+00 : f32
      %51 = vector.broadcast %cst_35 : f32 to vector<16x128xf32>
      %52 = arith.maximumf %44, %51 : vector<16x128xf32>
      %c0_36 = arith.constant 0 : index
      %c0_37 = arith.constant 0 : index
      %53 = vector.load %arg20[%c0_36, %c0_37] : memref<16x128xf32, #tpu.memory_space<vmem>>, vector<16x128xf32>
      tpu.vector_store %arg20[%c0_36, %c0_37], %52 {strides = array<i32>} : memref<16x128xf32, #tpu.memory_space<vmem>>, vector<16x128xf32>,
      %c0_38 = arith.constant 0 : index
      %c0_39 = arith.constant 0 : index
      %54 = vector.load %arg3[%c0_38, %c0_39] : memref<8x16xbf16, #tpu.memory_space<vmem>>, vector<8x16xbf16>
      %cst_40 = arith.constant dense<0.000000e+00> : vector<8x128xf32>
      %55 = tpu.matmul %54, %11, %cst_40 {dimension_numbers = #tpu.dot_dimension_numbers<[1], [0], [0], [1], [0, 0, 1, 1], [], []>} : vector<8x16xbf16>, vector<16x128xbf16>, vector<8x128xf32> -> vector<8x128xf32>
      %c0_41 = arith.constant 0 : index
      %c0_42 = arith.constant 0 : index
      %56 = vector.load %arg21[%c0_41, %c0_42] : memref<8x128xf32, #tpu.memory_space<vmem>>, vector<8x128xf32>
      %57 = arith.addf %55, %56 : vector<8x128xf32>
      %58 = arith.truncf %57 : vector<8x128xf32> to vector<8x128xbf16>
      %c0_43 = arith.constant 0 : index
      %c0_44 = arith.constant 0 : index
      %c0_45 = arith.constant 0 : index
      %59 = vector.load %arg12[%c0_43, %c0_44, %c0_45] : memref<1x128x128xbf16, #tpu.memory_space<vmem>>, vector<1x128x128xbf16>
      %60 = vector.shape_cast %59 : vector<1x128x128xbf16> to vector<128x128xbf16>
      %cst_46 = arith.constant dense<0.000000e+00> : vector<8x128xf32>
      %61 = tpu.matmul %58, %60, %cst_46 {dimension_numbers = #tpu.dot_dimension_numbers<[1], [0], [0], [1], [0, 0, 1, 1], [], []>} : vector<8x128xbf16>, vector<128x128xbf16>, vector<8x128xf32> -> vector<8x128xf32>
      %c0_47 = arith.constant 0 : index
      %c0_48 = arith.constant 0 : index
      %c0_49 = arith.constant 0 : index
      %62 = vector.load %arg13[%c0_47, %c0_48, %c0_49] : memref<1x1x128xf32, #tpu.memory_space<vmem>>, vector<1x1x128xf32>
      %63 = vector.shape_cast %62 : vector<1x1x128xf32> to vector<1x128xf32>
      %64 = vector.broadcast %63 : vector<1x128xf32> to vector<8x128xf32>
      %65 = arith.addf %61, %64 : vector<8x128xf32>
      %cst_50 = arith.constant 0.000000e+00 : f32
      %66 = vector.broadcast %cst_50 : f32 to vector<8x128xf32>
      %67 = arith.maximumf %65, %66 : vector<8x128xf32>
      %68 = arith.truncf %67 : vector<8x128xf32> to vector<8x128xbf16>
      %c0_51 = arith.constant 0 : index
      %c0_52 = arith.constant 0 : index
      %c0_53 = arith.constant 0 : index
      %69 = vector.load %arg14[%c0_51, %c0_52, %c0_53] : memref<1x128x128xbf16, #tpu.memory_space<vmem>>, vector<1x128x128xbf16>
      %70 = vector.shape_cast %69 : vector<1x128x128xbf16> to vector<128x128xbf16>
      %cst_54 = arith.constant dense<0.000000e+00> : vector<8x128xf32>
      %71 = tpu.matmul %68, %70, %cst_54 {dimension_numbers = #tpu.dot_dimension_numbers<[1], [0], [0], [1], [0, 0, 1, 1], [], []>} : vector<8x128xbf16>, vector<128x128xbf16>, vector<8x128xf32> -> vector<8x128xf32>
      %c0_55 = arith.constant 0 : index
      %c0_56 = arith.constant 0 : index
      %c0_57 = arith.constant 0 : index
      %72 = vector.load %arg15[%c0_55, %c0_56, %c0_57] : memref<1x1x128xf32, #tpu.memory_space<vmem>>, vector<1x1x128xf32>
      %73 = vector.shape_cast %72 : vector<1x1x128xf32> to vector<1x128xf32>
      %74 = vector.broadcast %73 : vector<1x128xf32> to vector<8x128xf32>
      %75 = arith.addf %71, %74 : vector<8x128xf32>
      %cst_58 = arith.constant 0.000000e+00 : f32
      %76 = vector.broadcast %cst_58 : f32 to vector<8x128xf32>
      %77 = arith.maximumf %75, %76 : vector<8x128xf32>
      %c0_59 = arith.constant 0 : index
      %c0_60 = arith.constant 0 : index
      %78 = vector.load %arg21[%c0_59, %c0_60] : memref<8x128xf32, #tpu.memory_space<vmem>>, vector<8x128xf32>
      tpu.vector_store %arg21[%c0_59, %c0_60], %77 {strides = array<i32>} : memref<8x128xf32, #tpu.memory_space<vmem>>, vector<8x128xf32>,
    } else {
    }
    %c4_i32_33 = arith.constant 4 : i32
    %48 = arith.cmpi eq, %arg0, %c4_i32_33 : i32
    %49 = arith.extui %48 : i1 to i32
    %c0_i32_34 = arith.constant 0 : i32
    %50 = arith.cmpi ne, %49, %c0_i32_34 : i32
    scf.if %50 {
      %c0_35 = arith.constant 0 : index
      %c0_36 = arith.constant 0 : index
      %51 = vector.load %arg3[%c0_35, %c0_36] : memref<8x16xbf16, #tpu.memory_space<vmem>>, vector<8x16xbf16>
      %52 = arith.truncf %44 : vector<16x128xf32> to vector<16x128xbf16>
      %cst_37 = arith.constant dense<0.000000e+00> : vector<8x128xf32>
      %53 = tpu.matmul %51, %52, %cst_37 {dimension_numbers = #tpu.dot_dimension_numbers<[1], [0], [0], [1], [0, 0, 1, 1], [], []>} : vector<8x16xbf16>, vector<16x128xbf16>, vector<8x128xf32> -> vector<8x128xf32>
      %c0_38 = arith.constant 0 : index
      %c0_39 = arith.constant 0 : index
      %54 = vector.load %arg4[%c0_38, %c0_39] : memref<8x1xf32, #tpu.memory_space<vmem>>, vector<8x1xf32>
      %55 = vector.broadcast %54 : vector<8x1xf32> to vector<8x128xf32>
      %56 = arith.mulf %53, %55 : vector<8x128xf32>
      %57 = arith.truncf %56 : vector<8x128xf32> to vector<8x128xbf16>
      %c0_40 = arith.constant 0 : index
      %c0_41 = arith.constant 0 : index
      %58 = vector.load %arg16[%c0_40, %c0_41] : memref<128x128xbf16, #tpu.memory_space<vmem>>, vector<128x128xbf16>
      %cst_42 = arith.constant dense<0.000000e+00> : vector<8x128xf32>
      %59 = tpu.matmul %57, %58, %cst_42 {dimension_numbers = #tpu.dot_dimension_numbers<[1], [0], [0], [1], [0, 0, 1, 1], [], []>} : vector<8x128xbf16>, vector<128x128xbf16>, vector<8x128xf32> -> vector<8x128xf32>
      %c0_43 = arith.constant 0 : index
      %c0_44 = arith.constant 0 : index
      %60 = vector.load %arg17[%c0_43, %c0_44] : memref<1x128xf32, #tpu.memory_space<vmem>>, vector<1x128xf32>
      %61 = vector.broadcast %60 : vector<1x128xf32> to vector<8x128xf32>
      %62 = arith.addf %59, %61 : vector<8x128xf32>
      %c0_45 = arith.constant 0 : index
      %c0_46 = arith.constant 0 : index
      %63 = vector.load %arg19[%c0_45, %c0_46] : memref<8x128xf32, #tpu.memory_space<vmem>>, vector<8x128xf32>
      tpu.vector_store %arg19[%c0_45, %c0_46], %62 {strides = array<i32>} : memref<8x128xf32, #tpu.memory_space<vmem>>, vector<8x128xf32>,
    } else {
    }
    return
  }
  func.func @transform_0(%arg0: i32) -> (i32, i32) {
    %c0_i32 = arith.constant 0 : i32
    %c0_i32_0 = arith.constant 0 : i32
    %c0_i32_1 = arith.constant 0 : i32
    return %c0_i32, %c0_i32_0 : i32, i32
  }
  func.func @transform_1(%arg0: i32) -> (i32, i32) {
    %c0_i32 = arith.constant 0 : i32
    %c0_i32_0 = arith.constant 0 : i32
    %c0_i32_1 = arith.constant 0 : i32
    return %c0_i32, %c0_i32_0 : i32, i32
  }
  func.func @transform_2(%arg0: i32) -> (i32, i32) {
    %c0_i32 = arith.constant 0 : i32
    %c0_i32_0 = arith.constant 0 : i32
    %c0_i32_1 = arith.constant 0 : i32
    return %c0_i32, %c0_i32_0 : i32, i32
  }
  func.func @transform_3(%arg0: i32) -> (i32, i32) {
    %c0_i32 = arith.constant 0 : i32
    %c0_i32_0 = arith.constant 0 : i32
    %c0_i32_1 = arith.constant 0 : i32
    return %c0_i32, %c0_i32_0 : i32, i32
  }
  func.func @transform_4(%arg0: i32) -> (i32, i32) {
    %c0_i32 = arith.constant 0 : i32
    %c0_i32_0 = arith.constant 0 : i32
    %c0_i32_1 = arith.constant 0 : i32
    return %c0_i32, %c0_i32_0 : i32, i32
  }
  func.func @transform_5(%arg0: i32) -> (i32, i32) {
    %c0_i32 = arith.constant 0 : i32
    %c0_i32_0 = arith.constant 0 : i32
    %c0_i32_1 = arith.constant 0 : i32
    return %c0_i32, %c0_i32_0 : i32, i32
  }
  func.func @transform_6(%arg0: i32) -> (i32, i32, i32) {
    %c0_i32 = arith.constant 0 : i32
    %c0_i32_0 = arith.constant 0 : i32
    %c0_i32_1 = arith.constant 0 : i32
    return %arg0, %c0_i32, %c0_i32_0 : i32, i32, i32
  }
  func.func @transform_7(%arg0: i32) -> (i32, i32, i32) {
    %c0_i32 = arith.constant 0 : i32
    %c0_i32_0 = arith.constant 0 : i32
    %c0_i32_1 = arith.constant 0 : i32
    return %arg0, %c0_i32, %c0_i32_0 : i32, i32, i32
  }
  func.func @transform_8(%arg0: i32) -> (i32, i32, i32) {
    %c0_i32 = arith.constant 0 : i32
    %c0_i32_0 = arith.constant 0 : i32
    %c0_i32_1 = arith.constant 0 : i32
    return %arg0, %c0_i32, %c0_i32_0 : i32, i32, i32
  }
  func.func @transform_9(%arg0: i32) -> (i32, i32, i32) {
    %c0_i32 = arith.constant 0 : i32
    %c0_i32_0 = arith.constant 0 : i32
    %c0_i32_1 = arith.constant 0 : i32
    return %arg0, %c0_i32, %c0_i32_0 : i32, i32, i32
  }
  func.func @transform_10(%arg0: i32) -> (i32, i32, i32) {
    %c0_i32 = arith.constant 0 : i32
    %c0_i32_0 = arith.constant 0 : i32
    %c0_i32_1 = arith.constant 0 : i32
    return %arg0, %c0_i32, %c0_i32_0 : i32, i32, i32
  }
  func.func @transform_11(%arg0: i32) -> (i32, i32, i32) {
    %c3_i32 = arith.constant 3 : i32
    %0 = arith.minsi %arg0, %c3_i32 : i32
    %c0_i32 = arith.constant 0 : i32
    %c0_i32_0 = arith.constant 0 : i32
    %c0_i32_1 = arith.constant 0 : i32
    return %0, %c0_i32, %c0_i32_0 : i32, i32, i32
  }
  func.func @transform_12(%arg0: i32) -> (i32, i32, i32) {
    %c3_i32 = arith.constant 3 : i32
    %0 = arith.minsi %arg0, %c3_i32 : i32
    %c0_i32 = arith.constant 0 : i32
    %c0_i32_0 = arith.constant 0 : i32
    %c0_i32_1 = arith.constant 0 : i32
    return %0, %c0_i32, %c0_i32_0 : i32, i32, i32
  }
  func.func @transform_13(%arg0: i32) -> (i32, i32, i32) {
    %c3_i32 = arith.constant 3 : i32
    %0 = arith.minsi %arg0, %c3_i32 : i32
    %c0_i32 = arith.constant 0 : i32
    %c0_i32_0 = arith.constant 0 : i32
    %c0_i32_1 = arith.constant 0 : i32
    return %0, %c0_i32, %c0_i32_0 : i32, i32, i32
  }
  func.func @transform_14(%arg0: i32) -> (i32, i32, i32) {
    %c3_i32 = arith.constant 3 : i32
    %0 = arith.minsi %arg0, %c3_i32 : i32
    %c0_i32 = arith.constant 0 : i32
    %c0_i32_0 = arith.constant 0 : i32
    %c0_i32_1 = arith.constant 0 : i32
    return %0, %c0_i32, %c0_i32_0 : i32, i32, i32
  }
  func.func @transform_15(%arg0: i32) -> (i32, i32) {
    %c0_i32 = arith.constant 0 : i32
    %c0_i32_0 = arith.constant 0 : i32
    %c0_i32_1 = arith.constant 0 : i32
    return %c0_i32, %c0_i32_0 : i32, i32
  }
  func.func @transform_16(%arg0: i32) -> (i32, i32) {
    %c0_i32 = arith.constant 0 : i32
    %c0_i32_0 = arith.constant 0 : i32
    %c0_i32_1 = arith.constant 0 : i32
    return %c0_i32, %c0_i32_0 : i32, i32
  }
  func.func @transform_17(%arg0: i32) -> i32 {
    %c0_i32 = arith.constant 0 : i32
    %c0_i32_0 = arith.constant 0 : i32
    return %c0_i32 : i32
  }
  func.func @transform_18(%arg0: i32) -> (i32, i32) {
    %c0_i32 = arith.constant 0 : i32
    %c0_i32_0 = arith.constant 0 : i32
    %c0_i32_1 = arith.constant 0 : i32
    return %c0_i32, %c0_i32_0 : i32, i32
  }
}

</mosaic_0001>

<llo_original>
// kernel: tpu_custom_call.1
$region0: #{tpu_custom_call.1}
  #allocation0 [shape = 'u32[]', space=smem, size = 0x4, offset = 0x4, fixed_abs, tag = 'smem constant byte address 0x4 - core index']
  #allocation1 [shape = 'u32[144,128]{1,0:T(1,128)}', space=vmem, size = 0x12000, scoped, tag = 'internal scratch']
  #allocation2 [shape = 'f32[16,128]{1,0:T(8,128)}', space=vmem, size = 0x2000, scoped, tag = 'scratch operand']
  #allocation3 [shape = 'f32[8,128]{1,0:T(8,128)}', space=vmem, size = 0x1000, scoped, tag = 'scratch operand']
  %s0 = inlined_call_operand.hbm [shape: f32[16,128], index: 0, kind: input, shape index: {}]
  %s1 = inlined_call_operand.vmem [shape: bf16[16,8], index: 1, kind: input, shape index: {}]
  %s2 = inlined_call_operand.hbm [shape: bf16[8,16], index: 2, kind: input, shape index: {}]
  %s3 = inlined_call_operand.vmem [shape: f32[8,1], index: 3, kind: input, shape index: {}]
  %s4 = inlined_call_operand.vmem [shape: bf16[32,16], index: 4, kind: input, shape index: {}]
  %s5 = inlined_call_operand.vmem [shape: bf16[16,32], index: 5, kind: input, shape index: {}]
  %s6 = inlined_call_operand.hbm [shape: bf16[5,32,128], index: 6, kind: input, shape index: {}]
  %s7 = inlined_call_operand.hbm [shape: bf16[5,128,128], index: 7, kind: input, shape index: {}]
  %s8 = inlined_call_operand.hbm [shape: f32[5,1,128], index: 8, kind: input, shape index: {}]
  %s9 = inlined_call_operand.hbm [shape: bf16[5,128,128], index: 9, kind: input, shape index: {}]
  %s10 = inlined_call_operand.hbm [shape: f32[5,1,128], index: 10, kind: input, shape index: {}]
  %s11 = inlined_call_operand.hbm [shape: bf16[4,128,128], index: 11, kind: input, shape index: {}]
  %s12 = inlined_call_operand.hbm [shape: f32[4,1,128], index: 12, kind: input, shape index: {}]
  %s13 = inlined_call_operand.hbm [shape: bf16[4,128,128], index: 13, kind: input, shape index: {}]
  %s14 = inlined_call_operand.hbm [shape: f32[4,1,128], index: 14, kind: input, shape index: {}]
  %s15 = inlined_call_operand.vmem [shape: bf16[128,128], index: 15, kind: input, shape index: {}]
  %s16 = inlined_call_operand.vmem [shape: f32[1,128], index: 16, kind: input, shape index: {}]
  %s17 = inlined_call_operand.vmem [shape: f32[5], index: 17, kind: input, shape index: {}]
  %s18 = inlined_call_operand.hbm [shape: f32[8,128], index: 18, kind: output, shape index: {}]
  %s19 = sld [smem:[#allocation0]]
  $region165: #{tpu_custom_call.1} parent=0
    _
  %s21 = ssub.s32 1, %s19
  %s22 = scalar_select 0, %s21, %s19
  $region1: #{tpu_custom_call.1} parent=0
    #allocation4 [shape = 'u8[8192]{0}', space=vmem, size = 0x2000, scoped, tag = 'input window, operand 0, single buffered']
    #allocation5 [shape = 's32[2]{0}', space=sflag, size = 0x8, scoped, tag = 'scoped memory for tpu_custom_call.1']
    #allocation6 [shape = 's32[2]{0}', space=sflag, size = 0x8, scoped, tag = 'scoped memory for tpu_custom_call.1']
    #allocation7 [shape = 's32[2]{0}', space=sflag, size = 0x8, scoped, tag = 'scoped memory for tpu_custom_call.1']
    #allocation8 [shape = 'u8[2048]{0}', space=vmem, size = 0x800, scoped, tag = 'input window, operand 2, single buffered']
    #allocation9 [shape = 's32[1]{0}', space=sflag, size = 0x4, scoped, tag = 'scoped memory for tpu_custom_call.1']
    #allocation10 [shape = 'u8[16384]{0}', space=vmem, size = 0x4000, scoped, tag = 'input window, operand 6']
    #allocation11 [shape = 'u8[65536]{0}', space=vmem, size = 0x10000, scoped, tag = 'input window, operand 7']
    #allocation12 [shape = 'u8[1024]{0}', space=vmem, size = 0x400, scoped, tag = 'input window, operand 8']
    #allocation13 [shape = 'u8[65536]{0}', space=vmem, size = 0x10000, scoped, tag = 'input window, operand 9']
    #allocation14 [shape = 'u8[1024]{0}', space=vmem, size = 0x400, scoped, tag = 'input window, operand 10']
    #allocation15 [shape = 'u8[65536]{0}', space=vmem, size = 0x10000, scoped, tag = 'input window, operand 11']
    #allocation16 [shape = 'u8[1024]{0}', space=vmem, size = 0x400, scoped, tag = 'input window, operand 12']
    #allocation17 [shape = 'u8[65536]{0}', space=vmem, size = 0x10000, scoped, tag = 'input window, operand 13']
    #allocation18 [shape = 'u8[1024]{0}', space=vmem, size = 0x400, scoped, tag = 'input window, operand 14']
    #allocation19 [shape = 'u8[512]{0}', space=smem, size = 0x200, scoped, tag = 'input window, operand 17, single buffered']
    #allocation20 [shape = 'u8[4096]{0}', space=vmem, size = 0x1000, scoped, tag = 'output window, operand 0, single buffered']
    %23 = vsyncpa [#allocation5], 0
    %24 = vsyncpa [#allocation9], 0
    %25 = vsyncpa [#allocation7], 0
    %26 = vsyncpa [#allocation6], 0
    loop: start=0, step=1, limit=7
    $region2: #{tpu_custom_call.1} parent=1 // loop_pre_header
      _
    $region3: #{tpu_custom_call.1} parent=1 // loop_header
      %s28 = sphi 0, %s32
      %p29 = scmp.ge.s32.totalorder %s28, 7
      %s36 = sphi 0, %s36
      %s38 = sphi 0, %s36
      %s39 = sphi 0, %s38
      %s53 = sphi 0, %s39
      %s57 = sphi 0, %s57
      %s59 = sphi 0, %s57
      %s60 = sphi 0, %s59
      %s74 = sphi 0, %s60
      %s78 = sphi 0, %s78
      %s80 = sphi 0, %s78
      %s81 = sphi 0, %s80
      %s95 = sphi 0, %s81
      %s99 = sphi 0, %s99
      %s101 = sphi 0, %s99
      %s102 = sphi 0, %s101
      %s116 = sphi 0, %s102
      %s120 = sphi 0, %s120
      %s122 = sphi 0, %s120
      %s123 = sphi 0, %s122
      %s137 = sphi 0, %s123
      %s141 = sphi 0, %s141
      %s143 = sphi 0, %s141
      %s144 = sphi 0, %s143
      %s158 = sphi 0, %s144
      %s164 = sphi 0, %s166
      %s167 = sphi 0, %s164
      %s168 = sphi 0, %s167
      %s184 = sphi 0, %s168
      %s190 = sphi 0, %s192
      %s193 = sphi 0, %s190
      %s194 = sphi 0, %s193
      %s210 = sphi 0, %s194
      %s216 = sphi 0, %s218
      %s219 = sphi 0, %s216
      %s220 = sphi 0, %s219
      %s236 = sphi 0, %s220
      %s242 = sphi 0, %s244
      %s245 = sphi 0, %s242
      %s246 = sphi 0, %s245
      %s262 = sphi 0, %s246
      %s268 = sphi 0, %s270
      %s271 = sphi 0, %s268
      %s272 = sphi 0, %s271
      %s288 = sphi 0, %s272
      %s298 = sphi 0, %s300
      %s301 = sphi 0, %s298
      %s302 = sphi 0, %s301
      %s318 = sphi 0, %s302
      %s328 = sphi 0, %s330
      %s331 = sphi 0, %s328
      %s332 = sphi 0, %s331
      %s348 = sphi 0, %s332
      %s358 = sphi 0, %s360
      %s361 = sphi 0, %s358
      %s362 = sphi 0, %s361
      %s378 = sphi 0, %s362
      %s388 = sphi 0, %s390
      %s391 = sphi 0, %s388
      %s392 = sphi 0, %s391
      %s408 = sphi 0, %s392
      %s412 = sphi 0, %s412
      %s414 = sphi 0, %s412
      %s415 = sphi 0, %s414
      %s429 = sphi 0, %s415
      %s433 = sphi 0, %s433
      %s435 = sphi 0, %s433
      %s436 = sphi 0, %s435
      %s450 = sphi 0, %s436
      %s454 = sphi 0, %s454
      %s456 = sphi 0, %s454
      %s457 = sphi 0, %s456
      %s471 = sphi 0, %s457
      %s475 = sphi 0, %s475
      %s477 = sphi 0, %s475
      %s478 = sphi 0, %s477
      %s492 = sphi 0, %s478
    $region4: #{tpu_custom_call.1} parent=1 // loop_header_branch
      %31 = sbr.rel (%p29) target = $region8
    $region5: #{tpu_custom_call.1} parent=1 // loop_body
      %s33 = ssub.s32 %s28, 1
      %s34 = ssub.s32 %s28, 2
      %s35 = sadd.s32 %s28, 1
      %s37 = sadd.s32 %s36, 1
      %p40 = scmp.eq.s32.totalorder %s28, 4
      %p41 = scmp.ne.s32.totalorder %s36, %s38
      %p42 = scmp.eq.s32.totalorder %s28, 0
      %p43 = por %p41, %p42
      %p44 = scmp.ne.s32.totalorder %s36, %s38
      %p45 = scmp.eq.s32.totalorder %s33, 4
      %p46 = por %p44, %p45
      %p47 = scmp.ne.s32.totalorder %s38, %s39
      %p48 = scmp.eq.s32.totalorder %s33, 0
      %p49 = por %p47, %p48
      %p50 = scmp.ne.s32.totalorder %s38, %s39
      %p51 = scmp.eq.s32.totalorder %s34, 4
      %p52 = por %p50, %p51
      %p54 = scmp.ne.s32.totalorder %s39, %s53
      %p55 = scmp.eq.s32.totalorder %s34, 0
      %p56 = por %p54, %p55
      %s58 = sadd.s32 %s57, 1
      %p61 = scmp.eq.s32.totalorder %s28, 4
      %p62 = scmp.ne.s32.totalorder %s57, %s59
      %p63 = scmp.eq.s32.totalorder %s28, 0
      %p64 = por %p62, %p63
      %p65 = scmp.ne.s32.totalorder %s57, %s59
      %p66 = scmp.eq.s32.totalorder %s33, 4
      %p67 = por %p65, %p66
      %p68 = scmp.ne.s32.totalorder %s59, %s60
      %p69 = scmp.eq.s32.totalorder %s33, 0
      %p70 = por %p68, %p69
      %p71 = scmp.ne.s32.totalorder %s59, %s60
      %p72 = scmp.eq.s32.totalorder %s34, 4
      %p73 = por %p71, %p72
      %p75 = scmp.ne.s32.totalorder %s60, %s74
      %p76 = scmp.eq.s32.totalorder %s34, 0
      %p77 = por %p75, %p76
      %s79 = sadd.s32 %s78, 1
      %p82 = scmp.eq.s32.totalorder %s28, 4
      %p83 = scmp.ne.s32.totalorder %s78, %s80
      %p84 = scmp.eq.s32.totalorder %s28, 0
      %p85 = por %p83, %p84
      %p86 = scmp.ne.s32.totalorder %s78, %s80
      %p87 = scmp.eq.s32.totalorder %s33, 4
      %p88 = por %p86, %p87
      %p89 = scmp.ne.s32.totalorder %s80, %s81
      %p90 = scmp.eq.s32.totalorder %s33, 0
      %p91 = por %p89, %p90
      %p92 = scmp.ne.s32.totalorder %s80, %s81
      %p93 = scmp.eq.s32.totalorder %s34, 4
      %p94 = por %p92, %p93
      %p96 = scmp.ne.s32.totalorder %s81, %s95
      %p97 = scmp.eq.s32.totalorder %s34, 0
      %p98 = por %p96, %p97
      %s100 = sadd.s32 %s99, 1
      %p103 = scmp.eq.s32.totalorder %s28, 4
      %p104 = scmp.ne.s32.totalorder %s99, %s101
      %p105 = scmp.eq.s32.totalorder %s28, 0
      %p106 = por %p104, %p105
      %p107 = scmp.ne.s32.totalorder %s99, %s101
      %p108 = scmp.eq.s32.totalorder %s33, 4
      %p109 = por %p107, %p108
      %p110 = scmp.ne.s32.totalorder %s101, %s102
      %p111 = scmp.eq.s32.totalorder %s33, 0
      %p112 = por %p110, %p111
      %p113 = scmp.ne.s32.totalorder %s101, %s102
      %p114 = scmp.eq.s32.totalorder %s34, 4
      %p115 = por %p113, %p114
      %p117 = scmp.ne.s32.totalorder %s102, %s116
      %p118 = scmp.eq.s32.totalorder %s34, 0
      %p119 = por %p117, %p118
      %s121 = sadd.s32 %s120, 1
      %p124 = scmp.eq.s32.totalorder %s28, 4
      %p125 = scmp.ne.s32.totalorder %s120, %s122
      %p126 = scmp.eq.s32.totalorder %s28, 0
      %p127 = por %p125, %p126
      %p128 = scmp.ne.s32.totalorder %s120, %s122
      %p129 = scmp.eq.s32.totalorder %s33, 4
      %p130 = por %p128, %p129
      %p131 = scmp.ne.s32.totalorder %s122, %s123
      %p132 = scmp.eq.s32.totalorder %s33, 0
      %p133 = por %p131, %p132
      %p134 = scmp.ne.s32.totalorder %s122, %s123
      %p135 = scmp.eq.s32.totalorder %s34, 4
      %p136 = por %p134, %p135
      %p138 = scmp.ne.s32.totalorder %s123, %s137
      %p139 = scmp.eq.s32.totalorder %s34, 0
      %p140 = por %p138, %p139
      %s142 = sadd.s32 %s141, 1
      %p145 = scmp.eq.s32.totalorder %s28, 4
      %p146 = scmp.ne.s32.totalorder %s141, %s143
      %p147 = scmp.eq.s32.totalorder %s28, 0
      %p148 = por %p146, %p147
      %p149 = scmp.ne.s32.totalorder %s141, %s143
      %p150 = scmp.eq.s32.totalorder %s33, 4
      %p151 = por %p149, %p150
      %p152 = scmp.ne.s32.totalorder %s143, %s144
      %p153 = scmp.eq.s32.totalorder %s33, 0
      %p154 = por %p152, %p153
      %p155 = scmp.ne.s32.totalorder %s143, %s144
      %p156 = scmp.eq.s32.totalorder %s34, 4
      %p157 = por %p155, %p156
      %p159 = scmp.ne.s32.totalorder %s144, %s158
      %p160 = scmp.eq.s32.totalorder %s34, 0
      %p161 = por %p159, %p160
      %s162 = ssub.s32 %s28, %s35
      %p163 = scmp.eq.s32.totalorder %s162, 0
      %s165 = sadd.s32 %s164, 1
      %s166 = scalar_select %p163, %s164, %s165
      %p169 = pneg %p163
      %p170 = scmp.eq.s32.totalorder %s28, 4
      %p171 = por %p169, %p170
      %p172 = scmp.ne.s32.totalorder %s164, %s167
      %p173 = scmp.eq.s32.totalorder %s28, 0
      %p174 = por %p172, %p173
      %p175 = scmp.ne.s32.totalorder %s164, %s167
      %p176 = scmp.eq.s32.totalorder %s33, 4
      %p177 = por %p175, %p176
      %p178 = scmp.ne.s32.totalorder %s167, %s168
      %p179 = scmp.eq.s32.totalorder %s33, 0
      %p180 = por %p178, %p179
      %p181 = scmp.ne.s32.totalorder %s167, %s168
      %p182 = scmp.eq.s32.totalorder %s34, 4
      %p183 = por %p181, %p182
      %p185 = scmp.ne.s32.totalorder %s168, %s184
      %p186 = scmp.eq.s32.totalorder %s34, 0
      %p187 = por %p185, %p186
      %s188 = ssub.s32 %s28, %s35
      %p189 = scmp.eq.s32.totalorder %s188, 0
      %s191 = sadd.s32 %s190, 1
      %s192 = scalar_select %p189, %s190, %s191
      %p195 = pneg %p189
      %p196 = scmp.eq.s32.totalorder %s28, 4
      %p197 = por %p195, %p196
      %p198 = scmp.ne.s32.totalorder %s190, %s193
      %p199 = scmp.eq.s32.totalorder %s28, 0
      %p200 = por %p198, %p199
      %p201 = scmp.ne.s32.totalorder %s190, %s193
      %p202 = scmp.eq.s32.totalorder %s33, 4
      %p203 = por %p201, %p202
      %p204 = scmp.ne.s32.totalorder %s193, %s194
      %p205 = scmp.eq.s32.totalorder %s33, 0
      %p206 = por %p204, %p205
      %p207 = scmp.ne.s32.totalorder %s193, %s194
      %p208 = scmp.eq.s32.totalorder %s34, 4
      %p209 = por %p207, %p208
      %p211 = scmp.ne.s32.totalorder %s194, %s210
      %p212 = scmp.eq.s32.totalorder %s34, 0
      %p213 = por %p211, %p212
      %s214 = ssub.s32 %s28, %s35
      %p215 = scmp.eq.s32.totalorder %s214, 0
      %s217 = sadd.s32 %s216, 1
      %s218 = scalar_select %p215, %s216, %s217
      %p221 = pneg %p215
      %p222 = scmp.eq.s32.totalorder %s28, 4
      %p223 = por %p221, %p222
      %p224 = scmp.ne.s32.totalorder %s216, %s219
      %p225 = scmp.eq.s32.totalorder %s28, 0
      %p226 = por %p224, %p225
      %p227 = scmp.ne.s32.totalorder %s216, %s219
      %p228 = scmp.eq.s32.totalorder %s33, 4
      %p229 = por %p227, %p228
      %p230 = scmp.ne.s32.totalorder %s219, %s220
      %p231 = scmp.eq.s32.totalorder %s33, 0
      %p232 = por %p230, %p231
      %p233 = scmp.ne.s32.totalorder %s219, %s220
      %p234 = scmp.eq.s32.totalorder %s34, 4
      %p235 = por %p233, %p234
      %p237 = scmp.ne.s32.totalorder %s220, %s236
      %p238 = scmp.eq.s32.totalorder %s34, 0
      %p239 = por %p237, %p238
      %s240 = ssub.s32 %s28, %s35
      %p241 = scmp.eq.s32.totalorder %s240, 0
      %s243 = sadd.s32 %s242, 1
      %s244 = scalar_select %p241, %s242, %s243
      %p247 = pneg %p241
      %p248 = scmp.eq.s32.totalorder %s28, 4
      %p249 = por %p247, %p248
      %p250 = scmp.ne.s32.totalorder %s242, %s245
      %p251 = scmp.eq.s32.totalorder %s28, 0
      %p252 = por %p250, %p251
      %p253 = scmp.ne.s32.totalorder %s242, %s245
      %p254 = scmp.eq.s32.totalorder %s33, 4
      %p255 = por %p253, %p254
      %p256 = scmp.ne.s32.totalorder %s245, %s246
      %p257 = scmp.eq.s32.totalorder %s33, 0
      %p258 = por %p256, %p257
      %p259 = scmp.ne.s32.totalorder %s245, %s246
      %p260 = scmp.eq.s32.totalorder %s34, 4
      %p261 = por %p259, %p260
      %p263 = scmp.ne.s32.totalorder %s246, %s262
      %p264 = scmp.eq.s32.totalorder %s34, 0
      %p265 = por %p263, %p264
      %s266 = ssub.s32 %s28, %s35
      %p267 = scmp.eq.s32.totalorder %s266, 0
      %s269 = sadd.s32 %s268, 1
      %s270 = scalar_select %p267, %s268, %s269
      %p273 = pneg %p267
      %p274 = scmp.eq.s32.totalorder %s28, 4
      %p275 = por %p273, %p274
      %p276 = scmp.ne.s32.totalorder %s268, %s271
      %p277 = scmp.eq.s32.totalorder %s28, 0
      %p278 = por %p276, %p277
      %p279 = scmp.ne.s32.totalorder %s268, %s271
      %p280 = scmp.eq.s32.totalorder %s33, 4
      %p281 = por %p279, %p280
      %p282 = scmp.ne.s32.totalorder %s271, %s272
      %p283 = scmp.eq.s32.totalorder %s33, 0
      %p284 = por %p282, %p283
      %p285 = scmp.ne.s32.totalorder %s271, %s272
      %p286 = scmp.eq.s32.totalorder %s34, 4
      %p287 = por %p285, %p286
      %p289 = scmp.ne.s32.totalorder %s272, %s288
      %p290 = scmp.eq.s32.totalorder %s34, 0
      %p291 = por %p289, %p290
      %p292 = scmp.lt.s32.totalorder %s28, 3
      %s293 = scalar_select %p292, %s28, 3
      %p294 = scmp.lt.s32.totalorder %s35, 3
      %s295 = scalar_select %p294, %s35, 3
      %s296 = ssub.s32 %s293, %s295
      %p297 = scmp.eq.s32.totalorder %s296, 0
      %s299 = sadd.s32 %s298, 1
      %s300 = scalar_select %p297, %s298, %s299
      %p303 = pneg %p297
      %p304 = scmp.eq.s32.totalorder %s28, 4
      %p305 = por %p303, %p304
      %p306 = scmp.ne.s32.totalorder %s298, %s301
      %p307 = scmp.eq.s32.totalorder %s28, 0
      %p308 = por %p306, %p307
      %p309 = scmp.ne.s32.totalorder %s298, %s301
      %p310 = scmp.eq.s32.totalorder %s33, 4
      %p311 = por %p309, %p310
      %p312 = scmp.ne.s32.totalorder %s301, %s302
      %p313 = scmp.eq.s32.totalorder %s33, 0
      %p314 = por %p312, %p313
      %p315 = scmp.ne.s32.totalorder %s301, %s302
      %p316 = scmp.eq.s32.totalorder %s34, 4
      %p317 = por %p315, %p316
      %p319 = scmp.ne.s32.totalorder %s302, %s318
      %p320 = scmp.eq.s32.totalorder %s34, 0
      %p321 = por %p319, %p320
      %p322 = scmp.lt.s32.totalorder %s28, 3
      %s323 = scalar_select %p322, %s28, 3
      %p324 = scmp.lt.s32.totalorder %s35, 3
      %s325 = scalar_select %p324, %s35, 3
      %s326 = ssub.s32 %s323, %s325
      %p327 = scmp.eq.s32.totalorder %s326, 0
      %s329 = sadd.s32 %s328, 1
      %s330 = scalar_select %p327, %s328, %s329
      %p333 = pneg %p327
      %p334 = scmp.eq.s32.totalorder %s28, 4
      %p335 = por %p333, %p334
      %p336 = scmp.ne.s32.totalorder %s328, %s331
      %p337 = scmp.eq.s32.totalorder %s28, 0
      %p338 = por %p336, %p337
      %p339 = scmp.ne.s32.totalorder %s328, %s331
      %p340 = scmp.eq.s32.totalorder %s33, 4
      %p341 = por %p339, %p340
      %p342 = scmp.ne.s32.totalorder %s331, %s332
      %p343 = scmp.eq.s32.totalorder %s33, 0
      %p344 = por %p342, %p343
      %p345 = scmp.ne.s32.totalorder %s331, %s332
      %p346 = scmp.eq.s32.totalorder %s34, 4
      %p347 = por %p345, %p346
      %p349 = scmp.ne.s32.totalorder %s332, %s348
      %p350 = scmp.eq.s32.totalorder %s34, 0
      %p351 = por %p349, %p350
      %p352 = scmp.lt.s32.totalorder %s28, 3
      %s353 = scalar_select %p352, %s28, 3
      %p354 = scmp.lt.s32.totalorder %s35, 3
      %s355 = scalar_select %p354, %s35, 3
      %s356 = ssub.s32 %s353, %s355
      %p357 = scmp.eq.s32.totalorder %s356, 0
      %s359 = sadd.s32 %s358, 1
      %s360 = scalar_select %p357, %s358, %s359
      %p363 = pneg %p357
      %p364 = scmp.eq.s32.totalorder %s28, 4
      %p365 = por %p363, %p364
      %p366 = scmp.ne.s32.totalorder %s358, %s361
      %p367 = scmp.eq.s32.totalorder %s28, 0
      %p368 = por %p366, %p367
      %p369 = scmp.ne.s32.totalorder %s358, %s361
      %p370 = scmp.eq.s32.totalorder %s33, 4
      %p371 = por %p369, %p370
      %p372 = scmp.ne.s32.totalorder %s361, %s362
      %p373 = scmp.eq.s32.totalorder %s33, 0
      %p374 = por %p372, %p373
      %p375 = scmp.ne.s32.totalorder %s361, %s362
      %p376 = scmp.eq.s32.totalorder %s34, 4
      %p377 = por %p375, %p376
      %p379 = scmp.ne.s32.totalorder %s362, %s378
      %p380 = scmp.eq.s32.totalorder %s34, 0
      %p381 = por %p379, %p380
      %p382 = scmp.lt.s32.totalorder %s28, 3
      %s383 = scalar_select %p382, %s28, 3
      %p384 = scmp.lt.s32.totalorder %s35, 3
      %s385 = scalar_select %p384, %s35, 3
      %s386 = ssub.s32 %s383, %s385
      %p387 = scmp.eq.s32.totalorder %s386, 0
      %s389 = sadd.s32 %s388, 1
      %s390 = scalar_select %p387, %s388, %s389
      %p393 = pneg %p387
      %p394 = scmp.eq.s32.totalorder %s28, 4
      %p395 = por %p393, %p394
      %p396 = scmp.ne.s32.totalorder %s388, %s391
      %p397 = scmp.eq.s32.totalorder %s28, 0
      %p398 = por %p396, %p397
      %p399 = scmp.ne.s32.totalorder %s388, %s391
      %p400 = scmp.eq.s32.totalorder %s33, 4
      %p401 = por %p399, %p400
      %p402 = scmp.ne.s32.totalorder %s391, %s392
      %p403 = scmp.eq.s32.totalorder %s33, 0
      %p404 = por %p402, %p403
      %p405 = scmp.ne.s32.totalorder %s391, %s392
      %p406 = scmp.eq.s32.totalorder %s34, 4
      %p407 = por %p405, %p406
      %p409 = scmp.ne.s32.totalorder %s392, %s408
      %p410 = scmp.eq.s32.totalorder %s34, 0
      %p411 = por %p409, %p410
      %s413 = sadd.s32 %s412, 1
      %p416 = scmp.eq.s32.totalorder %s28, 4
      %p417 = scmp.ne.s32.totalorder %s412, %s414
      %p418 = scmp.eq.s32.totalorder %s28, 0
      %p419 = por %p417, %p418
      %p420 = scmp.ne.s32.totalorder %s412, %s414
      %p421 = scmp.eq.s32.totalorder %s33, 4
      %p422 = por %p420, %p421
      %p423 = scmp.ne.s32.totalorder %s414, %s415
      %p424 = scmp.eq.s32.totalorder %s33, 0
      %p425 = por %p423, %p424
      %p426 = scmp.ne.s32.totalorder %s414, %s415
      %p427 = scmp.eq.s32.totalorder %s34, 4
      %p428 = por %p426, %p427
      %p430 = scmp.ne.s32.totalorder %s415, %s429
      %p431 = scmp.eq.s32.totalorder %s34, 0
      %p432 = por %p430, %p431
      %s434 = sadd.s32 %s433, 1
      %p437 = scmp.eq.s32.totalorder %s28, 4
      %p438 = scmp.ne.s32.totalorder %s433, %s435
      %p439 = scmp.eq.s32.totalorder %s28, 0
      %p440 = por %p438, %p439
      %p441 = scmp.ne.s32.totalorder %s433, %s435
      %p442 = scmp.eq.s32.totalorder %s33, 4
      %p443 = por %p441, %p442
      %p444 = scmp.ne.s32.totalorder %s435, %s436
      %p445 = scmp.eq.s32.totalorder %s33, 0
      %p446 = por %p444, %p445
      %p447 = scmp.ne.s32.totalorder %s435, %s436
      %p448 = scmp.eq.s32.totalorder %s34, 4
      %p449 = por %p447, %p448
      %p451 = scmp.ne.s32.totalorder %s436, %s450
      %p452 = scmp.eq.s32.totalorder %s34, 0
      %p453 = por %p451, %p452
      %s455 = sadd.s32 %s454, 1
      %p458 = scmp.eq.s32.totalorder %s28, 4
      %p459 = scmp.ne.s32.totalorder %s454, %s456
      %p460 = scmp.eq.s32.totalorder %s28, 0
      %p461 = por %p459, %p460
      %p462 = scmp.ne.s32.totalorder %s454, %s456
      %p463 = scmp.eq.s32.totalorder %s33, 4
      %p464 = por %p462, %p463
      %p465 = scmp.ne.s32.totalorder %s456, %s457
      %p466 = scmp.eq.s32.totalorder %s33, 0
      %p467 = por %p465, %p466
      %p468 = scmp.ne.s32.totalorder %s456, %s457
      %p469 = scmp.eq.s32.totalorder %s34, 4
      %p470 = por %p468, %p469
      %p472 = scmp.ne.s32.totalorder %s457, %s471
      %p473 = scmp.eq.s32.totalorder %s34, 0
      %p474 = por %p472, %p473
      %s476 = sadd.s32 %s475, 1
      %p479 = scmp.eq.s32.totalorder %s28, 4
      %p480 = scmp.ne.s32.totalorder %s475, %s477
      %p481 = scmp.eq.s32.totalorder %s28, 0
      %p482 = por %p480, %p481
      %p483 = scmp.ne.s32.totalorder %s475, %s477
      %p484 = scmp.eq.s32.totalorder %s33, 4
      %p485 = por %p483, %p484
      %p486 = scmp.ne.s32.totalorder %s477, %s478
      %p487 = scmp.eq.s32.totalorder %s33, 0
      %p488 = por %p486, %p487
      %p489 = scmp.ne.s32.totalorder %s477, %s478
      %p490 = scmp.eq.s32.totalorder %s34, 4
      %p491 = por %p489, %p490
      %p493 = scmp.ne.s32.totalorder %s478, %s492
      %p494 = scmp.eq.s32.totalorder %s34, 0
      %p495 = por %p493, %p494
      %p496 = scmp.le.s32.totalorder 1, %s28
      %p497 = scmp.lt.s32.totalorder %s28, 6
      %p498 = pnand %p496, %p497
      %p499 = pneg %p498
      // Predicated region
      $region9: #{tpu_custom_call.1} parent=5 // pred_check
        _
      $region10: #{tpu_custom_call.1} parent=5 // pred_check_branch
        %501 = sbr.rel (%p498) target = $region12
      $region11: #{tpu_custom_call.1} parent=5 // pred_region
        %s502 = ssub.s32 %s28, 1
        // Predicated region
        $region13: #{tpu_custom_call.1} parent=11 // pred_check
          %p503 = pneg %p49
        $region14: #{tpu_custom_call.1} parent=11 // pred_check_branch
          %505 = sbr.rel (%p503) target = $region16
        $region15: #{tpu_custom_call.1} parent=11 // pred_region
          %s507 = ssub.s32 256, 256
          %508 = vsyncadd [#allocation5], %s507
          %s509 = sshll.u32 [#allocation4], 4
          %s510 = int_to_ptr.vmem [resolvable:$true] %s509
          %515 = dma.hbm_to_vmem [thread:$0]  %s0, 256, %s510, [#allocation5], 128, 128, 8
        $region16: #{tpu_custom_call.1} parent=11 // pred_fallthru
          _
        // Predicated region
        $region17: #{tpu_custom_call.1} parent=11 // pred_check
          %p516 = pneg %p70
        $region18: #{tpu_custom_call.1} parent=11 // pred_check_branch
          %518 = sbr.rel (%p516) target = $region20
        $region19: #{tpu_custom_call.1} parent=11 // pred_region
          _
        $region20: #{tpu_custom_call.1} parent=11 // pred_fallthru
          _
        // Predicated region
        $region21: #{tpu_custom_call.1} parent=11 // pred_check
          %p519 = pneg %p91
        $region22: #{tpu_custom_call.1} parent=11 // pred_check_branch
          %521 = sbr.rel (%p519) target = $region24
        $region23: #{tpu_custom_call.1} parent=11 // pred_region
          %s523 = ssub.s32 64, 64
          %524 = vsyncadd [#allocation9], %s523
          %s526 = sshll.u32 [#allocation8], 4
          %s527 = int_to_ptr.vmem [resolvable:$true] %s526
          %529 = dma.hbm_to_vmem [thread:$0]  %s2, 64, %s527, [#allocation9]
        $region24: #{tpu_custom_call.1} parent=11 // pred_fallthru
          _
        // Predicated region
        $region25: #{tpu_custom_call.1} parent=11 // pred_check
          %p530 = pneg %p112
        $region26: #{tpu_custom_call.1} parent=11 // pred_check_branch
          %532 = sbr.rel (%p530) target = $region28
        $region27: #{tpu_custom_call.1} parent=11 // pred_region
          _
        $region28: #{tpu_custom_call.1} parent=11 // pred_fallthru
          _
        // Predicated region
        $region29: #{tpu_custom_call.1} parent=11 // pred_check
          %p533 = pneg %p133
        $region30: #{tpu_custom_call.1} parent=11 // pred_check_branch
          %535 = sbr.rel (%p533) target = $region32
        $region31: #{tpu_custom_call.1} parent=11 // pred_region
          _
        $region32: #{tpu_custom_call.1} parent=11 // pred_fallthru
          _
        // Predicated region
        $region33: #{tpu_custom_call.1} parent=11 // pred_check
          %p536 = pneg %p154
        $region34: #{tpu_custom_call.1} parent=11 // pred_check_branch
          %538 = sbr.rel (%p536) target = $region36
        $region35: #{tpu_custom_call.1} parent=11 // pred_region
          _
        $region36: #{tpu_custom_call.1} parent=11 // pred_fallthru
          _
        // Predicated region
        $region37: #{tpu_custom_call.1} parent=11 // pred_check
          %p539 = pneg %p425
        $region38: #{tpu_custom_call.1} parent=11 // pred_check_branch
          %541 = sbr.rel (%p539) target = $region40
        $region39: #{tpu_custom_call.1} parent=11 // pred_region
          _
        $region40: #{tpu_custom_call.1} parent=11 // pred_fallthru
          _
        // Predicated region
        $region41: #{tpu_custom_call.1} parent=11 // pred_check
          %p542 = pneg %p446
        $region42: #{tpu_custom_call.1} parent=11 // pred_check_branch
          %544 = sbr.rel (%p542) target = $region44
        $region43: #{tpu_custom_call.1} parent=11 // pred_region
          _
        $region44: #{tpu_custom_call.1} parent=11 // pred_fallthru
          _
        // Predicated region
        $region45: #{tpu_custom_call.1} parent=11 // pred_check
          %p545 = pneg %p467
        $region46: #{tpu_custom_call.1} parent=11 // pred_check_branch
          %547 = sbr.rel (%p545) target = $region48
        $region47: #{tpu_custom_call.1} parent=11 // pred_region
          %s549 = ssub.s32 16, 16
          %550 = vsyncadd [#allocation7], %s549
          %s552 = sshll.u32 %s17, 4
          %s553 = int_to_ptr.vmem [resolvable:$true] %s552
          %555 = dma.vmem_to_smem %s553, 16, [#allocation19], [#allocation7]
        $region48: #{tpu_custom_call.1} parent=11 // pred_fallthru
          _
      $region12: #{tpu_custom_call.1} parent=5 // pred_fallthru
        _
      %p556 = scmp.lt.s32.totalorder %s28, 5
      // Predicated region
      $region49: #{tpu_custom_call.1} parent=5 // pred_check
        %p557 = pneg %p556
      $region50: #{tpu_custom_call.1} parent=5 // pred_check_branch
        %559 = sbr.rel (%p557) target = $region52
      $region51: #{tpu_custom_call.1} parent=5 // pred_region
        // Predicated region
        $region53: #{tpu_custom_call.1} parent=51 // pred_check
          %p560 = pneg %p174
        $region54: #{tpu_custom_call.1} parent=51 // pred_check_branch
          %562 = sbr.rel (%p560) target = $region56
        $region55: #{tpu_custom_call.1} parent=51 // pred_region
          %s563 = sand.u32 %s28, 1
          %s564 = scalar_lea.sflag [#allocation5], %s563
          %s565 = sand.u32 %s164, 1
          %s566 = smul.addr %s565, 16
          %s567 = scalar_lea.vmem [#allocation10], %s566
          %s569 = ssub.s32 256, 256
          %570 = vsyncadd %s564, %s569
          %s571 = smul.addr %s28, 4
          %s572 = smul.addr %s571, 64
          %s573 = scalar_lea.hbm %s6, %s572
          %s574 = sshll.u32 %s567, 4
          %s575 = int_to_ptr.vmem [resolvable:$true] %s574
          %580 = dma.hbm_to_vmem [thread:$0]  %s573, 256, %s575, %s564, 64, 64, 4
        $region56: #{tpu_custom_call.1} parent=51 // pred_fallthru
          _
        // Predicated region
        $region57: #{tpu_custom_call.1} parent=51 // pred_check
          %p581 = pneg %p200
        $region58: #{tpu_custom_call.1} parent=51 // pred_check_branch
          %583 = sbr.rel (%p581) target = $region60
        $region59: #{tpu_custom_call.1} parent=51 // pred_region
          %s584 = sand.u32 %s28, 1
          %s585 = scalar_lea.sflag [#allocation5], %s584
          %s586 = sand.u32 %s190, 1
          %s587 = smul.addr %s586, 64
          %s588 = scalar_lea.vmem [#allocation11], %s587
          %s590 = ssub.s32 1024, 1024
          %591 = vsyncadd %s585, %s590
          %s592 = smul.addr %s28, 16
          %s593 = smul.addr %s592, 64
          %s594 = scalar_lea.hbm %s7, %s593
          %s595 = sshll.u32 %s588, 4
          %s596 = int_to_ptr.vmem [resolvable:$true] %s595
          %601 = dma.hbm_to_vmem [thread:$0]  %s594, 1024, %s596, %s585, 64, 64, 4
        $region60: #{tpu_custom_call.1} parent=51 // pred_fallthru
          _
        // Predicated region
        $region61: #{tpu_custom_call.1} parent=51 // pred_check
          %p602 = pneg %p226
        $region62: #{tpu_custom_call.1} parent=51 // pred_check_branch
          %604 = sbr.rel (%p602) target = $region64
        $region63: #{tpu_custom_call.1} parent=51 // pred_region
          %s605 = sand.u32 %s28, 1
          %s606 = scalar_lea.sflag [#allocation5], %s605
          %s607 = sand.u32 %s216, 1
          %s608 = scalar_lea.vmem [#allocation12], %s607
          %s610 = ssub.s32 16, 16
          %611 = vsyncadd %s606, %s610
          %s612 = smul.addr %s28, 16
          %s613 = scalar_lea.hbm %s8, %s612
          %s615 = sshll.u32 %s608, 4
          %s616 = int_to_ptr.vmem [resolvable:$true] %s615
          %618 = dma.hbm_to_vmem [thread:$0]  %s613, 16, %s616, %s606
        $region64: #{tpu_custom_call.1} parent=51 // pred_fallthru
          _
        // Predicated region
        $region65: #{tpu_custom_call.1} parent=51 // pred_check
          %p619 = pneg %p252
        $region66: #{tpu_custom_call.1} parent=51 // pred_check_branch
          %621 = sbr.rel (%p619) target = $region68
        $region67: #{tpu_custom_call.1} parent=51 // pred_region
          %s622 = sand.u32 %s28, 1
          %s623 = scalar_lea.sflag [#allocation5], %s622
          %s624 = sand.u32 %s242, 1
          %s625 = smul.addr %s624, 64
          %s626 = scalar_lea.vmem [#allocation13], %s625
          %s628 = ssub.s32 1024, 1024
          %629 = vsyncadd %s623, %s628
          %s630 = smul.addr %s28, 16
          %s631 = smul.addr %s630, 64
          %s632 = scalar_lea.hbm %s9, %s631
          %s633 = sshll.u32 %s626, 4
          %s634 = int_to_ptr.vmem [resolvable:$true] %s633
          %639 = dma.hbm_to_vmem [thread:$0]  %s632, 1024, %s634, %s623, 64, 64, 4
        $region68: #{tpu_custom_call.1} parent=51 // pred_fallthru
          _
        // Predicated region
        $region69: #{tpu_custom_call.1} parent=51 // pred_check
          %p640 = pneg %p278
        $region70: #{tpu_custom_call.1} parent=51 // pred_check_branch
          %642 = sbr.rel (%p640) target = $region72
        $region71: #{tpu_custom_call.1} parent=51 // pred_region
          %s643 = sand.u32 %s28, 1
          %s644 = scalar_lea.sflag [#allocation5], %s643
          %s645 = sand.u32 %s268, 1
          %s646 = scalar_lea.vmem [#allocation14], %s645
          %s648 = ssub.s32 16, 16
          %649 = vsyncadd %s644, %s648
          %s650 = smul.addr %s28, 16
          %s651 = scalar_lea.hbm %s10, %s650
          %s653 = sshll.u32 %s646, 4
          %s654 = int_to_ptr.vmem [resolvable:$true] %s653
          %656 = dma.hbm_to_vmem [thread:$0]  %s651, 16, %s654, %s644
        $region72: #{tpu_custom_call.1} parent=51 // pred_fallthru
          _
        // Predicated region
        $region73: #{tpu_custom_call.1} parent=51 // pred_check
          %p657 = pneg %p308
        $region74: #{tpu_custom_call.1} parent=51 // pred_check_branch
          %659 = sbr.rel (%p657) target = $region76
        $region75: #{tpu_custom_call.1} parent=51 // pred_region
          %s660 = sand.u32 %s28, 1
          %s661 = scalar_lea.sflag [#allocation5], %s660
          %s662 = sand.u32 %s298, 1
          %s663 = smul.addr %s662, 64
          %s664 = scalar_lea.vmem [#allocation15], %s663
          %p665 = scmp.lt.s32.totalorder %s28, 3
          %s666 = scalar_select %p665, %s28, 3
          %s668 = ssub.s32 1024, 1024
          %669 = vsyncadd %s661, %s668
          %s670 = smul.addr %s666, 16
          %s671 = smul.addr %s670, 64
          %s672 = scalar_lea.hbm %s11, %s671
          %s673 = sshll.u32 %s664, 4
          %s674 = int_to_ptr.vmem [resolvable:$true] %s673
          %679 = dma.hbm_to_vmem [thread:$0]  %s672, 1024, %s674, %s661, 64, 64, 4
        $region76: #{tpu_custom_call.1} parent=51 // pred_fallthru
          _
        // Predicated region
        $region77: #{tpu_custom_call.1} parent=51 // pred_check
          %p680 = pneg %p338
        $region78: #{tpu_custom_call.1} parent=51 // pred_check_branch
          %682 = sbr.rel (%p680) target = $region80
        $region79: #{tpu_custom_call.1} parent=51 // pred_region
          %s683 = sand.u32 %s28, 1
          %s684 = scalar_lea.sflag [#allocation5], %s683
          %s685 = sand.u32 %s328, 1
          %s686 = scalar_lea.vmem [#allocation16], %s685
          %p687 = scmp.lt.s32.totalorder %s28, 3
          %s688 = scalar_select %p687, %s28, 3
          %s690 = ssub.s32 16, 16
          %691 = vsyncadd %s684, %s690
          %s692 = smul.addr %s688, 16
          %s693 = scalar_lea.hbm %s12, %s692
          %s695 = sshll.u32 %s686, 4
          %s696 = int_to_ptr.vmem [resolvable:$true] %s695
          %698 = dma.hbm_to_vmem [thread:$0]  %s693, 16, %s696, %s684
        $region80: #{tpu_custom_call.1} parent=51 // pred_fallthru
          _
        // Predicated region
        $region81: #{tpu_custom_call.1} parent=51 // pred_check
          %p699 = pneg %p368
        $region82: #{tpu_custom_call.1} parent=51 // pred_check_branch
          %701 = sbr.rel (%p699) target = $region84
        $region83: #{tpu_custom_call.1} parent=51 // pred_region
          %s702 = sand.u32 %s28, 1
          %s703 = scalar_lea.sflag [#allocation5], %s702
          %s704 = sand.u32 %s358, 1
          %s705 = smul.addr %s704, 64
          %s706 = scalar_lea.vmem [#allocation17], %s705
          %p707 = scmp.lt.s32.totalorder %s28, 3
          %s708 = scalar_select %p707, %s28, 3
          %s710 = ssub.s32 1024, 1024
          %711 = vsyncadd %s703, %s710
          %s712 = smul.addr %s708, 16
          %s713 = smul.addr %s712, 64
          %s714 = scalar_lea.hbm %s13, %s713
          %s715 = sshll.u32 %s706, 4
          %s716 = int_to_ptr.vmem [resolvable:$true] %s715
          %721 = dma.hbm_to_vmem [thread:$0]  %s714, 1024, %s716, %s703, 64, 64, 4
        $region84: #{tpu_custom_call.1} parent=51 // pred_fallthru
          _
        // Predicated region
        $region85: #{tpu_custom_call.1} parent=51 // pred_check
          %p722 = pneg %p398
        $region86: #{tpu_custom_call.1} parent=51 // pred_check_branch
          %724 = sbr.rel (%p722) target = $region88
        $region87: #{tpu_custom_call.1} parent=51 // pred_region
          %s725 = sand.u32 %s28, 1
          %s726 = scalar_lea.sflag [#allocation5], %s725
          %s727 = sand.u32 %s388, 1
          %s728 = scalar_lea.vmem [#allocation18], %s727
          %p729 = scmp.lt.s32.totalorder %s28, 3
          %s730 = scalar_select %p729, %s28, 3
          %s732 = ssub.s32 16, 16
          %733 = vsyncadd %s726, %s732
          %s734 = smul.addr %s730, 16
          %s735 = scalar_lea.hbm %s14, %s734
          %s737 = sshll.u32 %s728, 4
          %s738 = int_to_ptr.vmem [resolvable:$true] %s737
          %740 = dma.hbm_to_vmem [thread:$0]  %s735, 16, %s738, %s726
        $region88: #{tpu_custom_call.1} parent=51 // pred_fallthru
          _
      $region52: #{tpu_custom_call.1} parent=5 // pred_fallthru
        _
      %p741 = scmp.le.s32.totalorder 1, %s28
      %p742 = scmp.lt.s32.totalorder %s28, 6
      %p743 = pnand %p741, %p742
      %p744 = pneg %p743
      // Predicated region
      $region89: #{tpu_custom_call.1} parent=5 // pred_check
        _
      $region90: #{tpu_custom_call.1} parent=5 // pred_check_branch
        %746 = sbr.rel (%p743) target = $region92
      $region91: #{tpu_custom_call.1} parent=5 // pred_region
        %s747 = ssub.s32 %s28, 1
        // Predicated region
        $region93: #{tpu_custom_call.1} parent=91 // pred_check
          %p748 = pneg %p49
        $region94: #{tpu_custom_call.1} parent=91 // pred_check_branch
          %750 = sbr.rel (%p748) target = $region96
        $region95: #{tpu_custom_call.1} parent=91 // pred_region
          %751 = dma.done [#allocation5], 256
        $region96: #{tpu_custom_call.1} parent=91 // pred_fallthru
          _
        // Predicated region
        $region97: #{tpu_custom_call.1} parent=91 // pred_check
          %p752 = pneg %p91
        $region98: #{tpu_custom_call.1} parent=91 // pred_check_branch
          %754 = sbr.rel (%p752) target = $region100
        $region99: #{tpu_custom_call.1} parent=91 // pred_region
          %755 = dma.done [#allocation9], 64
        $region100: #{tpu_custom_call.1} parent=91 // pred_fallthru
          _
        %s756 = sand.u32 %s33, 1
        %s757 = scalar_lea.sflag [#allocation5], %s756
        %s758 = sand.u32 %s167, 1
        %s759 = smul.addr %s758, 16
        %s760 = scalar_lea.vmem [#allocation10], %s759
        // Predicated region
        $region101: #{tpu_custom_call.1} parent=91 // pred_check
          %p761 = pneg %p180
        $region102: #{tpu_custom_call.1} parent=91 // pred_check_branch
          %763 = sbr.rel (%p761) target = $region104
        $region103: #{tpu_custom_call.1} parent=91 // pred_region
          %764 = dma.done %s757, 256
        $region104: #{tpu_custom_call.1} parent=91 // pred_fallthru
          _
        %s765 = sand.u32 %s33, 1
        %s766 = scalar_lea.sflag [#allocation5], %s765
        %s767 = sand.u32 %s193, 1
        %s768 = smul.addr %s767, 64
        %s769 = scalar_lea.vmem [#allocation11], %s768
        // Predicated region
        $region105: #{tpu_custom_call.1} parent=91 // pred_check
          %p770 = pneg %p206
        $region106: #{tpu_custom_call.1} parent=91 // pred_check_branch
          %772 = sbr.rel (%p770) target = $region108
        $region107: #{tpu_custom_call.1} parent=91 // pred_region
          %773 = dma.done %s766, 1024
        $region108: #{tpu_custom_call.1} parent=91 // pred_fallthru
          _
        %s774 = sand.u32 %s33, 1
        %s775 = scalar_lea.sflag [#allocation5], %s774
        %s776 = sand.u32 %s219, 1
        %s777 = scalar_lea.vmem [#allocation12], %s776
        // Predicated region
        $region109: #{tpu_custom_call.1} parent=91 // pred_check
          %p778 = pneg %p232
        $region110: #{tpu_custom_call.1} parent=91 // pred_check_branch
          %780 = sbr.rel (%p778) target = $region112
        $region111: #{tpu_custom_call.1} parent=91 // pred_region
          %781 = dma.done %s775, 16
        $region112: #{tpu_custom_call.1} parent=91 // pred_fallthru
          _
        %s782 = sand.u32 %s33, 1
        %s783 = scalar_lea.sflag [#allocation5], %s782
        %s784 = sand.u32 %s245, 1
        %s785 = smul.addr %s784, 64
        %s786 = scalar_lea.vmem [#allocation13], %s785
        // Predicated region
        $region113: #{tpu_custom_call.1} parent=91 // pred_check
          %p787 = pneg %p258
        $region114: #{tpu_custom_call.1} parent=91 // pred_check_branch
          %789 = sbr.rel (%p787) target = $region116
        $region115: #{tpu_custom_call.1} parent=91 // pred_region
          %790 = dma.done %s783, 1024
        $region116: #{tpu_custom_call.1} parent=91 // pred_fallthru
          _
        %s791 = sand.u32 %s33, 1
        %s792 = scalar_lea.sflag [#allocation5], %s791
        %s793 = sand.u32 %s271, 1
        %s794 = scalar_lea.vmem [#allocation14], %s793
        // Predicated region
        $region117: #{tpu_custom_call.1} parent=91 // pred_check
          %p795 = pneg %p284
        $region118: #{tpu_custom_call.1} parent=91 // pred_check_branch
          %797 = sbr.rel (%p795) target = $region120
        $region119: #{tpu_custom_call.1} parent=91 // pred_region
          %798 = dma.done %s792, 16
        $region120: #{tpu_custom_call.1} parent=91 // pred_fallthru
          _
        %s799 = sand.u32 %s33, 1
        %s800 = scalar_lea.sflag [#allocation5], %s799
        %s801 = sand.u32 %s301, 1
        %s802 = smul.addr %s801, 64
        %s803 = scalar_lea.vmem [#allocation15], %s802
        // Predicated region
        $region121: #{tpu_custom_call.1} parent=91 // pred_check
          %p804 = pneg %p314
        $region122: #{tpu_custom_call.1} parent=91 // pred_check_branch
          %806 = sbr.rel (%p804) target = $region124
        $region123: #{tpu_custom_call.1} parent=91 // pred_region
          %807 = dma.done %s800, 1024
        $region124: #{tpu_custom_call.1} parent=91 // pred_fallthru
          _
        %s808 = sand.u32 %s33, 1
        %s809 = scalar_lea.sflag [#allocation5], %s808
        %s810 = sand.u32 %s331, 1
        %s811 = scalar_lea.vmem [#allocation16], %s810
        // Predicated region
        $region125: #{tpu_custom_call.1} parent=91 // pred_check
          %p812 = pneg %p344
        $region126: #{tpu_custom_call.1} parent=91 // pred_check_branch
          %814 = sbr.rel (%p812) target = $region128
        $region127: #{tpu_custom_call.1} parent=91 // pred_region
          %815 = dma.done %s809, 16
        $region128: #{tpu_custom_call.1} parent=91 // pred_fallthru
          _
        %s816 = sand.u32 %s33, 1
        %s817 = scalar_lea.sflag [#allocation5], %s816
        %s818 = sand.u32 %s361, 1
        %s819 = smul.addr %s818, 64
        %s820 = scalar_lea.vmem [#allocation17], %s819
        // Predicated region
        $region129: #{tpu_custom_call.1} parent=91 // pred_check
          %p821 = pneg %p374
        $region130: #{tpu_custom_call.1} parent=91 // pred_check_branch
          %823 = sbr.rel (%p821) target = $region132
        $region131: #{tpu_custom_call.1} parent=91 // pred_region
          %824 = dma.done %s817, 1024
        $region132: #{tpu_custom_call.1} parent=91 // pred_fallthru
          _
        %s825 = sand.u32 %s33, 1
        %s826 = scalar_lea.sflag [#allocation5], %s825
        %s827 = sand.u32 %s391, 1
        %s828 = scalar_lea.vmem [#allocation18], %s827
        // Predicated region
        $region133: #{tpu_custom_call.1} parent=91 // pred_check
          %p829 = pneg %p404
        $region134: #{tpu_custom_call.1} parent=91 // pred_check_branch
          %831 = sbr.rel (%p829) target = $region136
        $region135: #{tpu_custom_call.1} parent=91 // pred_region
          %832 = dma.done %s826, 16
        $region136: #{tpu_custom_call.1} parent=91 // pred_fallthru
          _
        // Predicated region
        $region137: #{tpu_custom_call.1} parent=91 // pred_check
          %p833 = pneg %p467
        $region138: #{tpu_custom_call.1} parent=91 // pred_check_branch
          %835 = sbr.rel (%p833) target = $region140
        $region139: #{tpu_custom_call.1} parent=91 // pred_region
          %836 = dma.done [#allocation7], 16
        $region140: #{tpu_custom_call.1} parent=91 // pred_fallthru
          _
        %837 = sfence
        %p838 = pneg %p49
        %p839 = pneg %p46
        %p840 = pneg %p70
        %p841 = pneg %p67
        %p842 = pneg %p91
        %p843 = pneg %p88
        %p844 = pneg %p112
        %p845 = pneg %p109
        %p846 = pneg %p133
        %p847 = pneg %p130
        %p848 = pneg %p154
        %p849 = pneg %p151
        %s850 = sand.u32 %s33, 1
        %s851 = scalar_lea.sflag [#allocation5], %s850
        %s852 = sand.u32 %s167, 1
        %s853 = smul.addr %s852, 16
        %s854 = scalar_lea.vmem [#allocation10], %s853
        %p855 = pneg %p180
        %p856 = pneg %p177
        %s857 = sand.u32 %s33, 1
        %s858 = scalar_lea.sflag [#allocation5], %s857
        %s859 = sand.u32 %s193, 1
        %s860 = smul.addr %s859, 64
        %s861 = scalar_lea.vmem [#allocation11], %s860
        %p862 = pneg %p206
        %p863 = pneg %p203
        %s864 = sand.u32 %s33, 1
        %s865 = scalar_lea.sflag [#allocation5], %s864
        %s866 = sand.u32 %s219, 1
        %s867 = scalar_lea.vmem [#allocation12], %s866
        %p868 = pneg %p232
        %p869 = pneg %p229
        %s870 = sand.u32 %s33, 1
        %s871 = scalar_lea.sflag [#allocation5], %s870
        %s872 = sand.u32 %s245, 1
        %s873 = smul.addr %s872, 64
        %s874 = scalar_lea.vmem [#allocation13], %s873
        %p875 = pneg %p258
        %p876 = pneg %p255
        %s877 = sand.u32 %s33, 1
        %s878 = scalar_lea.sflag [#allocation5], %s877
        %s879 = sand.u32 %s271, 1
        %s880 = scalar_lea.vmem [#allocation14], %s879
        %p881 = pneg %p284
        %p882 = pneg %p281
        %s883 = sand.u32 %s33, 1
        %s884 = scalar_lea.sflag [#allocation5], %s883
        %s885 = sand.u32 %s301, 1
        %s886 = smul.addr %s885, 64
        %s887 = scalar_lea.vmem [#allocation15], %s886
        %p888 = pneg %p314
        %p889 = pneg %p311
        %s890 = sand.u32 %s33, 1
        %s891 = scalar_lea.sflag [#allocation5], %s890
        %s892 = sand.u32 %s331, 1
        %s893 = scalar_lea.vmem [#allocation16], %s892
        %p894 = pneg %p344
        %p895 = pneg %p341
        %s896 = sand.u32 %s33, 1
        %s897 = scalar_lea.sflag [#allocation5], %s896
        %s898 = sand.u32 %s361, 1
        %s899 = smul.addr %s898, 64
        %s900 = scalar_lea.vmem [#allocation17], %s899
        %p901 = pneg %p374
        %p902 = pneg %p371
        %s903 = sand.u32 %s33, 1
        %s904 = scalar_lea.sflag [#allocation5], %s903
        %s905 = sand.u32 %s391, 1
        %s906 = scalar_lea.vmem [#allocation18], %s905
        %p907 = pneg %p404
        %p908 = pneg %p401
        %p909 = pneg %p425
        %p910 = pneg %p422
        %p911 = pneg %p446
        %p912 = pneg %p443
        %p913 = pneg %p467
        %p914 = pneg %p464
        %p915 = pneg %p488
        %p916 = pneg %p485
        %p917 = scmp.lt.s32.totalorder %s33, 3
        %s918 = scalar_select %p917, %s33, 3
        %p919 = scmp.lt.s32.totalorder %s33, 3
        %s920 = scalar_select %p919, %s33, 3
        %p921 = scmp.lt.s32.totalorder %s33, 3
        %s922 = scalar_select %p921, %s33, 3
        %p923 = scmp.lt.s32.totalorder %s33, 3
        %s924 = scalar_select %p923, %s33, 3
        %p926 = scmp.eq.s32.totalorder %s33, 0
        // Predicated region
        $region141: #{tpu_custom_call.1} parent=91 // pred_check
          %p927 = pneg %p926
        $region142: #{tpu_custom_call.1} parent=91 // pred_check_branch
          %929 = sbr.rel (%p927) target = $region144
        $region143: #{tpu_custom_call.1} parent=91 // pred_region
          %v930 = vld [vmem:[#allocation4] sm:$0xff]
          %v931 = vld [vmem:[#allocation4 + $0x8] sm:$0xff]
          %932 = vst [vmem:[#allocation2] sm:$0xff] %v930
          %933 = vst [vmem:[#allocation2 + $0x8] sm:$0xff] %v931
          %934 = vst [vmem:[#allocation3] sm:$0xff] 0.0
        $region144: #{tpu_custom_call.1} parent=91 // pred_fallthru
          _
        %s935 = sld [smem:[#allocation19 + %s33]]
        %v936 = vld [vmem:[#allocation2] sm:$0xff]
        %v937 = vld [vmem:[#allocation2 + $0x8] sm:$0xff]
        %v938 = vld [vmem:[%s1] sm:$0xf]
        %v939 = vld [vmem:[%s1 + $0x4] sm:$0xf]
        %v940 = vld [vmem:[#allocation3] sm:$0xff]
        %v941 = vpack.c.bf16 %v940, %v940
        %v944 = vunpack.c.l.b16 %v938
        %v945 = vunpack.c.l.b16 %v939
        %v946 = vpack.c.b16 %v945, %v944
        %vm947 = vcmask 64512
        %v949 = vsel %vm947, %v946, 0
        %vm951 = vcmask 1043456
        %v953 = vsel %vm951, %v941, 0
        %955 = vmatprep.subr.bf16.mxu0 0
        %956 = vmatpush1.bf16.msra.mxu0 0
        %957 = vmatprep.subr.bf16.mxu0 0
        %958 = vmatpush1.bf16.msra.mxu0 0
        %959 = vmatprep.subr.bf16.mxu0 0
        %960 = vmatpush1.bf16.msra.mxu0 0
        %961 = vmatprep.subr.bf16.mxu0 0
        %962 = vmatpush1.bf16.msra.mxu0 0
        %963 = vmatprep.subr.bf16.mxu0 0
        %964 = vmatpush1.bf16.msra.mxu0 0
        %965 = vmatprep.subr.bf16.mxu0 0
        %966 = vmatpush1.bf16.msra.mxu0 0
        %967 = vmatprep.subr.bf16.mxu0 0
        %968 = vmatpush1.bf16.msra.mxu0 0
        %969 = vmatprep.subr.bf16.mxu0 0
        %970 = vmatpush1.bf16.msra.mxu0 %v953
        %971 = vmatprep.subr.bf16.mxu0 0
        %972 = vmatpush2.bf16.msra.mxu0 0
        %973 = vmatprep.subr.bf16.mxu0 0
        %974 = vmatpush2.bf16.msra.mxu0 0
        %975 = vmatprep.subr.bf16.mxu0 0
        %976 = vmatpush2.bf16.msra.mxu0 0
        %977 = vmatprep.subr.bf16.mxu0 0
        %978 = vmatpush2.bf16.msra.mxu0 0
        %979 = vmatprep.subr.bf16.mxu0 0
        %980 = vmatpush2.bf16.msra.mxu0 0
        %981 = vmatprep.subr.bf16.mxu0 0
        %982 = vmatpush2.bf16.msra.mxu0 0
        %983 = vmatprep.subr.bf16.mxu0 0
        %984 = vmatpush2.bf16.msra.mxu0 0
        %985 = vmatprep.subr.bf16.mxu0 0
        %986 = vmatpush2.bf16.msra.mxu0 0
        %987 = vmatprep.mubr.bf16.mxu0 0
        %988 = vmatmul.mubr.bf16.gmra.mxu0 %v949
        %v989 = vpop.f32.mrf.mxu0
        %v990 = vadd.f32 0.0, %v989
        %v991 = vpop.f32.mrf.mxu0
        %v992 = vpop.f32.mrf.mxu0
        %v993 = vadd.f32 0.0, %v992
        %v994 = vpop.f32.mrf.mxu0
        %995 = vdwg.mxu0
        %v996 = vadd.f32 %v936, %v990
        %v997 = vadd.f32 %v937, %v993
        %v998 = vpack.c.bf16 %v997, %v996
        %v999 = vld [vmem:[%s4] sm:$0xf]
        %v1000 = vld [vmem:[%s4 + $0x4] sm:$0xf]
        %v1001 = vld [vmem:[%s4 + $0x8] sm:$0xf]
        %v1002 = vld [vmem:[%s4 + $0xc] sm:$0xf]
        %v1003 = vld [vmem:[%s760] sm:$0xf]
        %v1004 = vld [vmem:[%s760 + $0x4] sm:$0xf]
        %v1005 = vld [vmem:[%s760 + $0x8] sm:$0xf]
        %v1006 = vld [vmem:[%s760 + $0xc] sm:$0xf]
        %v1007 = vunpack.c.l.bf16 %v1003
        %v1008 = vunpack.c.l.bf16 %v1004
        %v1009 = vunpack.c.l.bf16 %v1005
        %v1010 = vunpack.c.l.bf16 %v1006
        %v1015 = vunpack.c.l.b16 %v999
        %v1016 = vunpack.c.l.b16 %v1000
        %v1017 = vunpack.c.l.b16 %v1001
        %v1018 = vunpack.c.l.b16 %v1002
        %v1019 = vpack.c.b16 %v1016, %v1015
        %v1020 = vpack.c.b16 %v1018, %v1017
        %vm1021 = vcmask 130048
        %v1023 = vsel %vm1021, %v1019, 0
        %v1026 = vsel %vm1021, %v1020, 0
        %1028 = vmatprep.subr.bf16.mxu0 0
        %1029 = vmatpush1.bf16.msra.mxu0 0
        %1030 = vmatprep.subr.bf16.mxu0 0
        %1031 = vmatpush1.bf16.msra.mxu0 0
        %1032 = vmatprep.subr.bf16.mxu0 0
        %1033 = vmatpush1.bf16.msra.mxu0 0
        %1034 = vmatprep.subr.bf16.mxu0 0
        %1035 = vmatpush1.bf16.msra.mxu0 0
        %1036 = vmatprep.subr.bf16.mxu0 0
        %1037 = vmatpush1.bf16.msra.mxu0 0
        %1038 = vmatprep.subr.bf16.mxu0 0
        %1039 = vmatpush1.bf16.msra.mxu0 0
        %1040 = vmatprep.subr.bf16.mxu0 0
        %1041 = vmatpush1.bf16.msra.mxu0 0
        %1042 = vmatprep.subr.bf16.mxu0 0
        %1043 = vmatpush1.bf16.msra.mxu0 %v998
        %1044 = vmatprep.subr.bf16.mxu0 0
        %1045 = vmatpush2.bf16.msra.mxu0 0
        %1046 = vmatprep.subr.bf16.mxu0 0
        %1047 = vmatpush2.bf16.msra.mxu0 0
        %1048 = vmatprep.subr.bf16.mxu0 0
        %1049 = vmatpush2.bf16.msra.mxu0 0
        %1050 = vmatprep.subr.bf16.mxu0 0
        %1051 = vmatpush2.bf16.msra.mxu0 0
        %1052 = vmatprep.subr.bf16.mxu0 0
        %1053 = vmatpush2.bf16.msra.mxu0 0
        %1054 = vmatprep.subr.bf16.mxu0 0
        %1055 = vmatpush2.bf16.msra.mxu0 0
        %1056 = vmatprep.subr.bf16.mxu0 0
        %1057 = vmatpush2.bf16.msra.mxu0 0
        %1058 = vmatprep.subr.bf16.mxu0 0
        %1059 = vmatpush2.bf16.msra.mxu0 0
        %1060 = vmatprep.mubr.bf16.mxu0 0
        %1061 = vmatmul.mubr.bf16.gmra.mxu0 %v1023
        %v1062 = vpop.f32.mrf.mxu0
        %v1063 = vadd.f32 %v1007, %v1062
        %v1064 = vpop.f32.mrf.mxu0
        %v1065 = vpop.f32.mrf.mxu0
        %v1066 = vadd.f32 %v1008, %v1065
        %v1067 = vpop.f32.mrf.mxu0
        %1068 = vmatprep.mubr.bf16.mxu0 0
        %1069 = vmatmul.mubr.bf16.gmra.mxu0 %v1026
        %v1070 = vpop.f32.mrf.mxu0
        %v1071 = vadd.f32 %v1009, %v1070
        %v1072 = vpop.f32.mrf.mxu0
        %v1073 = vpop.f32.mrf.mxu0
        %v1074 = vadd.f32 %v1010, %v1073
        %v1075 = vpop.f32.mrf.mxu0
        %1076 = vdwg.mxu0
        %v1077 = vmax.f32 %v1063, 0.0
        %v1078 = vmax.f32 %v1066, 0.0
        %v1079 = vmax.f32 %v1071, 0.0
        %v1080 = vmax.f32 %v1074, 0.0
        %v1081 = vld [vmem:[%s5] sm:$0xf]
        %v1082 = vld [vmem:[%s5 + $0x4] sm:$0xf]
        %v1083 = vpack.c.bf16 %v1078, %v1077
        %v1084 = vpack.c.bf16 %v1080, %v1079
        %v1087 = vunpack.c.l.b16 %v1081
        %v1088 = vunpack.c.l.b16 %v1082
        %v1089 = vpack.c.b16 %v1088, %v1087
        %vm1090 = vcmask 261120
        %v1092 = vsel %vm1090, %v1089, 0
        %1094 = vmatprep.subr.bf16.mxu0 0
        %1095 = vmatpush1.bf16.msra.mxu0 0
        %1096 = vmatprep.subr.bf16.mxu0 0
        %1097 = vmatpush1.bf16.msra.mxu0 0
        %1098 = vmatprep.subr.bf16.mxu0 0
        %1099 = vmatpush1.bf16.msra.mxu0 0
        %1100 = vmatprep.subr.bf16.mxu0 0
        %1101 = vmatpush1.bf16.msra.mxu0 0
        %1102 = vmatprep.subr.bf16.mxu0 0
        %1103 = vmatpush1.bf16.msra.mxu0 0
        %1104 = vmatprep.subr.bf16.mxu0 0
        %1105 = vmatpush1.bf16.msra.mxu0 0
        %1106 = vmatprep.subr.bf16.mxu0 0
        %1107 = vmatpush1.bf16.msra.mxu0 %v1084
        %1108 = vmatprep.subr.bf16.mxu0 0
        %1109 = vmatpush1.bf16.msra.mxu0 %v1083
        %1110 = vmatprep.subr.bf16.mxu0 0
        %1111 = vmatpush2.bf16.msra.mxu0 0
        %1112 = vmatprep.subr.bf16.mxu0 0
        %1113 = vmatpush2.bf16.msra.mxu0 0
        %1114 = vmatprep.subr.bf16.mxu0 0
        %1115 = vmatpush2.bf16.msra.mxu0 0
        %1116 = vmatprep.subr.bf16.mxu0 0
        %1117 = vmatpush2.bf16.msra.mxu0 0
        %1118 = vmatprep.subr.bf16.mxu0 0
        %1119 = vmatpush2.bf16.msra.mxu0 0
        %1120 = vmatprep.subr.bf16.mxu0 0
        %1121 = vmatpush2.bf16.msra.mxu0 0
        %1122 = vmatprep.subr.bf16.mxu0 0
        %1123 = vmatpush2.bf16.msra.mxu0 0
        %1124 = vmatprep.subr.bf16.mxu0 0
        %1125 = vmatpush2.bf16.msra.mxu0 0
        %1126 = vmatprep.mubr.bf16.mxu0 0
        %1127 = vmatmul.mubr.bf16.gmra.mxu0 %v1092
        %v1128 = vpop.f32.mrf.mxu0
        %v1129 = vadd.f32 0.0, %v1128
        %v1130 = vpop.f32.mrf.mxu0
        %v1131 = vpop.f32.mrf.mxu0
        %v1132 = vadd.f32 0.0, %v1131
        %v1133 = vpop.f32.mrf.mxu0
        %1134 = vdwg.mxu0
        %s1135 = sadd.f32 %s935, 1.0
        %v1136 = vstv %s1135
        %v1137 = vmul.f32 %v1136, %v996
        %v1138 = vmul.f32 %v1136, %v997
        %v1139 = vadd.f32 %v1137, %v1129
        %v1140 = vadd.f32 %v1138, %v1132
        %v1141 = vpack.c.bf16 %v1140, %v1139
        %v1142 = vld [vmem:[%s769] sm:$0xf]
        %v1143 = vld [vmem:[%s769 + $0x4] sm:$0xf]
        %v1144 = vld [vmem:[%s769 + $0x8] sm:$0xf]
        %v1145 = vld [vmem:[%s769 + $0xc] sm:$0xf]
        %v1146 = vld [vmem:[%s769 + $0x10] sm:$0xf]
        %v1147 = vld [vmem:[%s769 + $0x14] sm:$0xf]
        %v1148 = vld [vmem:[%s769 + $0x18] sm:$0xf]
        %v1149 = vld [vmem:[%s769 + $0x1c] sm:$0xf]
        %v1150 = vld [vmem:[%s769 + $0x20] sm:$0xf]
        %v1151 = vld [vmem:[%s769 + $0x24] sm:$0xf]
        %v1152 = vld [vmem:[%s769 + $0x28] sm:$0xf]
        %v1153 = vld [vmem:[%s769 + $0x2c] sm:$0xf]
        %v1154 = vld [vmem:[%s769 + $0x30] sm:$0xf]
        %v1155 = vld [vmem:[%s769 + $0x34] sm:$0xf]
        %v1156 = vld [vmem:[%s769 + $0x38] sm:$0xf]
        %v1157 = vld [vmem:[%s769 + $0x3c] sm:$0xf]
        %v1158 = vld [vmem:[%s777] sm:$0x1]
        %v1160 = vlaneseq
        %v1161 = vshrl.u32 %v1160, 7
        %v1162 = vsub.s32 0, %v1161
        %v1163 = vrot.slane %v1158, %v1162
        %v1181 = vunpack.c.l.b16 %v1142
        %v1182 = vunpack.c.l.b16 %v1143
        %v1183 = vunpack.c.l.b16 %v1144
        %v1184 = vunpack.c.l.b16 %v1145
        %v1185 = vunpack.c.l.b16 %v1146
        %v1186 = vunpack.c.l.b16 %v1147
        %v1187 = vunpack.c.l.b16 %v1148
        %v1188 = vunpack.c.l.b16 %v1149
        %v1189 = vunpack.c.l.b16 %v1150
        %v1190 = vunpack.c.l.b16 %v1151
        %v1191 = vunpack.c.l.b16 %v1152
        %v1192 = vunpack.c.l.b16 %v1153
        %v1193 = vunpack.c.l.b16 %v1154
        %v1194 = vunpack.c.l.b16 %v1155
        %v1195 = vunpack.c.l.b16 %v1156
        %v1196 = vunpack.c.l.b16 %v1157
        %v1197 = vpack.c.b16 %v1182, %v1181
        %v1198 = vpack.c.b16 %v1184, %v1183
        %v1199 = vpack.c.b16 %v1186, %v1185
        %v1200 = vpack.c.b16 %v1188, %v1187
        %v1201 = vpack.c.b16 %v1190, %v1189
        %v1202 = vpack.c.b16 %v1192, %v1191
        %v1203 = vpack.c.b16 %v1194, %v1193
        %v1204 = vpack.c.b16 %v1196, %v1195
        %1213 = vmatprep.subr.bf16.mxu0 0
        %1214 = vmatpush1.bf16.msra.mxu0 %v1204
        %1215 = vmatprep.subr.bf16.mxu0 0
        %1216 = vmatpush1.bf16.msra.mxu0 %v1203
        %1217 = vmatprep.subr.bf16.mxu0 0
        %1218 = vmatpush1.bf16.msra.mxu0 %v1202
        %1219 = vmatprep.subr.bf16.mxu0 0
        %1220 = vmatpush1.bf16.msra.mxu0 %v1201
        %1221 = vmatprep.subr.bf16.mxu0 0
        %1222 = vmatpush1.bf16.msra.mxu0 %v1200
        %1223 = vmatprep.subr.bf16.mxu0 0
        %1224 = vmatpush1.bf16.msra.mxu0 %v1199
        %1225 = vmatprep.subr.bf16.mxu0 0
        %1226 = vmatpush1.bf16.msra.mxu0 %v1198
        %1227 = vmatprep.subr.bf16.mxu0 0
        %1228 = vmatpush1.bf16.msra.mxu0 %v1197
        %1229 = vmatprep.subr.bf16.mxu0 0
        %1230 = vmatpush2.bf16.msra.mxu0 0
        %1231 = vmatprep.subr.bf16.mxu0 0
        %1232 = vmatpush2.bf16.msra.mxu0 0
        %1233 = vmatprep.subr.bf16.mxu0 0
        %1234 = vmatpush2.bf16.msra.mxu0 0
        %1235 = vmatprep.subr.bf16.mxu0 0
        %1236 = vmatpush2.bf16.msra.mxu0 0
        %1237 = vmatprep.subr.bf16.mxu0 0
        %1238 = vmatpush2.bf16.msra.mxu0 0
        %1239 = vmatprep.subr.bf16.mxu0 0
        %1240 = vmatpush2.bf16.msra.mxu0 0
        %1241 = vmatprep.subr.bf16.mxu0 0
        %1242 = vmatpush2.bf16.msra.mxu0 0
        %1243 = vmatprep.subr.bf16.mxu0 0
        %1244 = vmatpush2.bf16.msra.mxu0 0
        %1245 = vmatprep.mubr.bf16.mxu0 0
        %1246 = vmatmul.mubr.bf16.gmra.mxu0 %v1141
        %v1247 = vpop.f32.mrf.mxu0
        %v1248 = vadd.f32 %v1163, %v1247
        %v1249 = vpop.f32.mrf.mxu0
        %v1250 = vpop.f32.mrf.mxu0
        %v1251 = vadd.f32 %v1163, %v1250
        %v1252 = vpop.f32.mrf.mxu0
        %1253 = vdwg.mxu0
        %v1254 = vmax.f32 %v1248, 0.0
        %v1255 = vmax.f32 %v1251, 0.0
        %v1256 = vpack.c.bf16 %v1255, %v1254
        %v1257 = vld [vmem:[%s786] sm:$0xf]
        %v1258 = vld [vmem:[%s786 + $0x4] sm:$0xf]
        %v1259 = vld [vmem:[%s786 + $0x8] sm:$0xf]
        %v1260 = vld [vmem:[%s786 + $0xc] sm:$0xf]
        %v1261 = vld [vmem:[%s786 + $0x10] sm:$0xf]
        %v1262 = vld [vmem:[%s786 + $0x14] sm:$0xf]
        %v1263 = vld [vmem:[%s786 + $0x18] sm:$0xf]
        %v1264 = vld [vmem:[%s786 + $0x1c] sm:$0xf]
        %v1265 = vld [vmem:[%s786 + $0x20] sm:$0xf]
        %v1266 = vld [vmem:[%s786 + $0x24] sm:$0xf]
        %v1267 = vld [vmem:[%s786 + $0x28] sm:$0xf]
        %v1268 = vld [vmem:[%s786 + $0x2c] sm:$0xf]
        %v1269 = vld [vmem:[%s786 + $0x30] sm:$0xf]
        %v1270 = vld [vmem:[%s786 + $0x34] sm:$0xf]
        %v1271 = vld [vmem:[%s786 + $0x38] sm:$0xf]
        %v1272 = vld [vmem:[%s786 + $0x3c] sm:$0xf]
        %v1273 = vld [vmem:[%s794] sm:$0x1]
        %v1275 = vlaneseq
        %v1276 = vshrl.u32 %v1275, 7
        %v1277 = vsub.s32 0, %v1276
        %v1278 = vrot.slane %v1273, %v1277
        %v1296 = vunpack.c.l.b16 %v1257
        %v1297 = vunpack.c.l.b16 %v1258
        %v1298 = vunpack.c.l.b16 %v1259
        %v1299 = vunpack.c.l.b16 %v1260
        %v1300 = vunpack.c.l.b16 %v1261
        %v1301 = vunpack.c.l.b16 %v1262
        %v1302 = vunpack.c.l.b16 %v1263
        %v1303 = vunpack.c.l.b16 %v1264
        %v1304 = vunpack.c.l.b16 %v1265
        %v1305 = vunpack.c.l.b16 %v1266
        %v1306 = vunpack.c.l.b16 %v1267
        %v1307 = vunpack.c.l.b16 %v1268
        %v1308 = vunpack.c.l.b16 %v1269
        %v1309 = vunpack.c.l.b16 %v1270
        %v1310 = vunpack.c.l.b16 %v1271
        %v1311 = vunpack.c.l.b16 %v1272
        %v1312 = vpack.c.b16 %v1297, %v1296
        %v1313 = vpack.c.b16 %v1299, %v1298
        %v1314 = vpack.c.b16 %v1301, %v1300
        %v1315 = vpack.c.b16 %v1303, %v1302
        %v1316 = vpack.c.b16 %v1305, %v1304
        %v1317 = vpack.c.b16 %v1307, %v1306
        %v1318 = vpack.c.b16 %v1309, %v1308
        %v1319 = vpack.c.b16 %v1311, %v1310
        %1328 = vmatprep.subr.bf16.mxu0 0
        %1329 = vmatpush1.bf16.msra.mxu0 %v1319
        %1330 = vmatprep.subr.bf16.mxu0 0
        %1331 = vmatpush1.bf16.msra.mxu0 %v1318
        %1332 = vmatprep.subr.bf16.mxu0 0
        %1333 = vmatpush1.bf16.msra.mxu0 %v1317
        %1334 = vmatprep.subr.bf16.mxu0 0
        %1335 = vmatpush1.bf16.msra.mxu0 %v1316
        %1336 = vmatprep.subr.bf16.mxu0 0
        %1337 = vmatpush1.bf16.msra.mxu0 %v1315
        %1338 = vmatprep.subr.bf16.mxu0 0
        %1339 = vmatpush1.bf16.msra.mxu0 %v1314
        %1340 = vmatprep.subr.bf16.mxu0 0
        %1341 = vmatpush1.bf16.msra.mxu0 %v1313
        %1342 = vmatprep.subr.bf16.mxu0 0
        %1343 = vmatpush1.bf16.msra.mxu0 %v1312
        %1344 = vmatprep.subr.bf16.mxu0 0
        %1345 = vmatpush2.bf16.msra.mxu0 0
        %1346 = vmatprep.subr.bf16.mxu0 0
        %1347 = vmatpush2.bf16.msra.mxu0 0
        %1348 = vmatprep.subr.bf16.mxu0 0
        %1349 = vmatpush2.bf16.msra.mxu0 0
        %1350 = vmatprep.subr.bf16.mxu0 0
        %1351 = vmatpush2.bf16.msra.mxu0 0
        %1352 = vmatprep.subr.bf16.mxu0 0
        %1353 = vmatpush2.bf16.msra.mxu0 0
        %1354 = vmatprep.subr.bf16.mxu0 0
        %1355 = vmatpush2.bf16.msra.mxu0 0
        %1356 = vmatprep.subr.bf16.mxu0 0
        %1357 = vmatpush2.bf16.msra.mxu0 0
        %1358 = vmatprep.subr.bf16.mxu0 0
        %1359 = vmatpush2.bf16.msra.mxu0 0
        %1360 = vmatprep.mubr.bf16.mxu0 0
        %1361 = vmatmul.mubr.bf16.gmra.mxu0 %v1256
        %v1362 = vpop.f32.mrf.mxu0
        %v1363 = vadd.f32 %v1278, %v1362
        %v1364 = vpop.f32.mrf.mxu0
        %v1365 = vpop.f32.mrf.mxu0
        %v1366 = vadd.f32 %v1278, %v1365
        %v1367 = vpop.f32.mrf.mxu0
        %1368 = vdwg.mxu0
        %p1369 = scmp.ne.s32.totalorder %s33, 4
        // Predicated region
        $region145: #{tpu_custom_call.1} parent=91 // pred_check
          %p1370 = pneg %p1369
        $region146: #{tpu_custom_call.1} parent=91 // pred_check_branch
          %1372 = sbr.rel (%p1370) target = $region148
        $region147: #{tpu_custom_call.1} parent=91 // pred_region
          %v1373 = vmax.f32 %v1363, 0.0
          %v1374 = vmax.f32 %v1366, 0.0
          %1375 = vst [vmem:[#allocation2] sm:$0xff] %v1373
          %1376 = vst [vmem:[#allocation2 + $0x8] sm:$0xff] %v1374
          %v1377 = vld [vmem:[#allocation8] sm:$0xf]
          %v1378 = vld [vmem:[#allocation3] sm:$0xff]
          %v1380 = vsel %vm1021, %v1377, 0
          %1382 = vmatprep.subr.bf16.mxu0 0
          %1383 = vmatpush1.bf16.msra.mxu0 0
          %1384 = vmatprep.subr.bf16.mxu0 0
          %1385 = vmatpush1.bf16.msra.mxu0 0
          %1386 = vmatprep.subr.bf16.mxu0 0
          %1387 = vmatpush1.bf16.msra.mxu0 0
          %1388 = vmatprep.subr.bf16.mxu0 0
          %1389 = vmatpush1.bf16.msra.mxu0 0
          %1390 = vmatprep.subr.bf16.mxu0 0
          %1391 = vmatpush1.bf16.msra.mxu0 0
          %1392 = vmatprep.subr.bf16.mxu0 0
          %1393 = vmatpush1.bf16.msra.mxu0 0
          %1394 = vmatprep.subr.bf16.mxu0 0
          %1395 = vmatpush1.bf16.msra.mxu0 0
          %1396 = vmatprep.subr.bf16.mxu0 0
          %1397 = vmatpush1.bf16.msra.mxu0 %v998
          %1398 = vmatprep.subr.bf16.mxu0 0
          %1399 = vmatpush2.bf16.msra.mxu0 0
          %1400 = vmatprep.subr.bf16.mxu0 0
          %1401 = vmatpush2.bf16.msra.mxu0 0
          %1402 = vmatprep.subr.bf16.mxu0 0
          %1403 = vmatpush2.bf16.msra.mxu0 0
          %1404 = vmatprep.subr.bf16.mxu0 0
          %1405 = vmatpush2.bf16.msra.mxu0 0
          %1406 = vmatprep.subr.bf16.mxu0 0
          %1407 = vmatpush2.bf16.msra.mxu0 0
          %1408 = vmatprep.subr.bf16.mxu0 0
          %1409 = vmatpush2.bf16.msra.mxu0 0
          %1410 = vmatprep.subr.bf16.mxu0 0
          %1411 = vmatpush2.bf16.msra.mxu0 0
          %1412 = vmatprep.subr.bf16.mxu0 0
          %1413 = vmatpush2.bf16.msra.mxu0 0
          %1414 = vmatprep.mubr.bf16.mxu0 0
          %1415 = vmatmul.mubr.bf16.gmra.mxu0 %v1380
          %v1416 = vpop.f32.mrf.mxu0
          %v1417 = vadd.f32 %v1378, %v1416
          %v1418 = vpop.f32.mrf.mxu0
          %v1419 = vpop.f32.mrf.mxu0
          %v1420 = vpop.f32.mrf.mxu0
          %1421 = vdwg.mxu0
          %v1422 = vpack.c.bf16 %v1417, %v1417
          %v1423 = vld [vmem:[%s803] sm:$0xf]
          %v1424 = vld [vmem:[%s803 + $0x4] sm:$0xf]
          %v1425 = vld [vmem:[%s803 + $0x8] sm:$0xf]
          %v1426 = vld [vmem:[%s803 + $0xc] sm:$0xf]
          %v1427 = vld [vmem:[%s803 + $0x10] sm:$0xf]
          %v1428 = vld [vmem:[%s803 + $0x14] sm:$0xf]
          %v1429 = vld [vmem:[%s803 + $0x18] sm:$0xf]
          %v1430 = vld [vmem:[%s803 + $0x1c] sm:$0xf]
          %v1431 = vld [vmem:[%s803 + $0x20] sm:$0xf]
          %v1432 = vld [vmem:[%s803 + $0x24] sm:$0xf]
          %v1433 = vld [vmem:[%s803 + $0x28] sm:$0xf]
          %v1434 = vld [vmem:[%s803 + $0x2c] sm:$0xf]
          %v1435 = vld [vmem:[%s803 + $0x30] sm:$0xf]
          %v1436 = vld [vmem:[%s803 + $0x34] sm:$0xf]
          %v1437 = vld [vmem:[%s803 + $0x38] sm:$0xf]
          %v1438 = vld [vmem:[%s803 + $0x3c] sm:$0xf]
          %v1439 = vld [vmem:[%s811] sm:$0x1]
          %v1441 = vlaneseq
          %v1442 = vshrl.u32 %v1441, 7
          %v1443 = vsub.s32 0, %v1442
          %v1444 = vrot.slane %v1439, %v1443
          %v1462 = vunpack.c.l.b16 %v1423
          %v1463 = vunpack.c.l.b16 %v1424
          %v1464 = vunpack.c.l.b16 %v1425
          %v1465 = vunpack.c.l.b16 %v1426
          %v1466 = vunpack.c.l.b16 %v1427
          %v1467 = vunpack.c.l.b16 %v1428
          %v1468 = vunpack.c.l.b16 %v1429
          %v1469 = vunpack.c.l.b16 %v1430
          %v1470 = vunpack.c.l.b16 %v1431
          %v1471 = vunpack.c.l.b16 %v1432
          %v1472 = vunpack.c.l.b16 %v1433
          %v1473 = vunpack.c.l.b16 %v1434
          %v1474 = vunpack.c.l.b16 %v1435
          %v1475 = vunpack.c.l.b16 %v1436
          %v1476 = vunpack.c.l.b16 %v1437
          %v1477 = vunpack.c.l.b16 %v1438
          %v1478 = vpack.c.b16 %v1463, %v1462
          %v1479 = vpack.c.b16 %v1465, %v1464
          %v1480 = vpack.c.b16 %v1467, %v1466
          %v1481 = vpack.c.b16 %v1469, %v1468
          %v1482 = vpack.c.b16 %v1471, %v1470
          %v1483 = vpack.c.b16 %v1473, %v1472
          %v1484 = vpack.c.b16 %v1475, %v1474
          %v1485 = vpack.c.b16 %v1477, %v1476
          %1494 = vmatprep.subr.bf16.mxu0 0
          %1495 = vmatpush1.bf16.msra.mxu0 %v1485
          %1496 = vmatprep.subr.bf16.mxu0 0
          %1497 = vmatpush1.bf16.msra.mxu0 %v1484
          %1498 = vmatprep.subr.bf16.mxu0 0
          %1499 = vmatpush1.bf16.msra.mxu0 %v1483
          %1500 = vmatprep.subr.bf16.mxu0 0
          %1501 = vmatpush1.bf16.msra.mxu0 %v1482
          %1502 = vmatprep.subr.bf16.mxu0 0
          %1503 = vmatpush1.bf16.msra.mxu0 %v1481
          %1504 = vmatprep.subr.bf16.mxu0 0
          %1505 = vmatpush1.bf16.msra.mxu0 %v1480
          %1506 = vmatprep.subr.bf16.mxu0 0
          %1507 = vmatpush1.bf16.msra.mxu0 %v1479
          %1508 = vmatprep.subr.bf16.mxu0 0
          %1509 = vmatpush1.bf16.msra.mxu0 %v1478
          %1510 = vmatprep.subr.bf16.mxu0 0
          %1511 = vmatpush2.bf16.msra.mxu0 0
          %1512 = vmatprep.subr.bf16.mxu0 0
          %1513 = vmatpush2.bf16.msra.mxu0 0
          %1514 = vmatprep.subr.bf16.mxu0 0
          %1515 = vmatpush2.bf16.msra.mxu0 0
          %1516 = vmatprep.subr.bf16.mxu0 0
          %1517 = vmatpush2.bf16.msra.mxu0 0
          %1518 = vmatprep.subr.bf16.mxu0 0
          %1519 = vmatpush2.bf16.msra.mxu0 0
          %1520 = vmatprep.subr.bf16.mxu0 0
          %1521 = vmatpush2.bf16.msra.mxu0 0
          %1522 = vmatprep.subr.bf16.mxu0 0
          %1523 = vmatpush2.bf16.msra.mxu0 0
          %1524 = vmatprep.subr.bf16.mxu0 0
          %1525 = vmatpush2.bf16.msra.mxu0 0
          %1526 = vmatprep.mubr.bf16.mxu0 0
          %1527 = vmatmul.mubr.bf16.gmra.mxu0 %v1422
          %v1528 = vpop.f32.mrf.mxu0
          %v1529 = vadd.f32 %v1444, %v1528
          %v1530 = vpop.f32.mrf.mxu0
          %v1531 = vpop.f32.mrf.mxu0
          %v1532 = vpop.f32.mrf.mxu0
          %1533 = vdwg.mxu0
          %v1534 = vmax.f32 %v1529, 0.0
          %v1535 = vpack.c.bf16 %v1534, %v1534
          %v1536 = vld [vmem:[%s820] sm:$0xf]
          %v1537 = vld [vmem:[%s820 + $0x4] sm:$0xf]
          %v1538 = vld [vmem:[%s820 + $0x8] sm:$0xf]
          %v1539 = vld [vmem:[%s820 + $0xc] sm:$0xf]
          %v1540 = vld [vmem:[%s820 + $0x10] sm:$0xf]
          %v1541 = vld [vmem:[%s820 + $0x14] sm:$0xf]
          %v1542 = vld [vmem:[%s820 + $0x18] sm:$0xf]
          %v1543 = vld [vmem:[%s820 + $0x1c] sm:$0xf]
          %v1544 = vld [vmem:[%s820 + $0x20] sm:$0xf]
          %v1545 = vld [vmem:[%s820 + $0x24] sm:$0xf]
          %v1546 = vld [vmem:[%s820 + $0x28] sm:$0xf]
          %v1547 = vld [vmem:[%s820 + $0x2c] sm:$0xf]
          %v1548 = vld [vmem:[%s820 + $0x30] sm:$0xf]
          %v1549 = vld [vmem:[%s820 + $0x34] sm:$0xf]
          %v1550 = vld [vmem:[%s820 + $0x38] sm:$0xf]
          %v1551 = vld [vmem:[%s820 + $0x3c] sm:$0xf]
          %v1552 = vld [vmem:[%s828] sm:$0x1]
          %v1554 = vlaneseq
          %v1555 = vshrl.u32 %v1554, 7
          %v1556 = vsub.s32 0, %v1555
          %v1557 = vrot.slane %v1552, %v1556
          %v1575 = vunpack.c.l.b16 %v1536
          %v1576 = vunpack.c.l.b16 %v1537
          %v1577 = vunpack.c.l.b16 %v1538
          %v1578 = vunpack.c.l.b16 %v1539
          %v1579 = vunpack.c.l.b16 %v1540
          %v1580 = vunpack.c.l.b16 %v1541
          %v1581 = vunpack.c.l.b16 %v1542
          %v1582 = vunpack.c.l.b16 %v1543
          %v1583 = vunpack.c.l.b16 %v1544
          %v1584 = vunpack.c.l.b16 %v1545
          %v1585 = vunpack.c.l.b16 %v1546
          %v1586 = vunpack.c.l.b16 %v1547
          %v1587 = vunpack.c.l.b16 %v1548
          %v1588 = vunpack.c.l.b16 %v1549
          %v1589 = vunpack.c.l.b16 %v1550
          %v1590 = vunpack.c.l.b16 %v1551
          %v1591 = vpack.c.b16 %v1576, %v1575
          %v1592 = vpack.c.b16 %v1578, %v1577
          %v1593 = vpack.c.b16 %v1580, %v1579
          %v1594 = vpack.c.b16 %v1582, %v1581
          %v1595 = vpack.c.b16 %v1584, %v1583
          %v1596 = vpack.c.b16 %v1586, %v1585
          %v1597 = vpack.c.b16 %v1588, %v1587
          %v1598 = vpack.c.b16 %v1590, %v1589
          %1607 = vmatprep.subr.bf16.mxu0 0
          %1608 = vmatpush1.bf16.msra.mxu0 %v1598
          %1609 = vmatprep.subr.bf16.mxu0 0
          %1610 = vmatpush1.bf16.msra.mxu0 %v1597
          %1611 = vmatprep.subr.bf16.mxu0 0
          %1612 = vmatpush1.bf16.msra.mxu0 %v1596
          %1613 = vmatprep.subr.bf16.mxu0 0
          %1614 = vmatpush1.bf16.msra.mxu0 %v1595
          %1615 = vmatprep.subr.bf16.mxu0 0
          %1616 = vmatpush1.bf16.msra.mxu0 %v1594
          %1617 = vmatprep.subr.bf16.mxu0 0
          %1618 = vmatpush1.bf16.msra.mxu0 %v1593
          %1619 = vmatprep.subr.bf16.mxu0 0
          %1620 = vmatpush1.bf16.msra.mxu0 %v1592
          %1621 = vmatprep.subr.bf16.mxu0 0
          %1622 = vmatpush1.bf16.msra.mxu0 %v1591
          %1623 = vmatprep.subr.bf16.mxu0 0
          %1624 = vmatpush2.bf16.msra.mxu0 0
          %1625 = vmatprep.subr.bf16.mxu0 0
          %1626 = vmatpush2.bf16.msra.mxu0 0
          %1627 = vmatprep.subr.bf16.mxu0 0
          %1628 = vmatpush2.bf16.msra.mxu0 0
          %1629 = vmatprep.subr.bf16.mxu0 0
          %1630 = vmatpush2.bf16.msra.mxu0 0
          %1631 = vmatprep.subr.bf16.mxu0 0
          %1632 = vmatpush2.bf16.msra.mxu0 0
          %1633 = vmatprep.subr.bf16.mxu0 0
          %1634 = vmatpush2.bf16.msra.mxu0 0
          %1635 = vmatprep.subr.bf16.mxu0 0
          %1636 = vmatpush2.bf16.msra.mxu0 0
          %1637 = vmatprep.subr.bf16.mxu0 0
          %1638 = vmatpush2.bf16.msra.mxu0 0
          %1639 = vmatprep.mubr.bf16.mxu0 0
          %1640 = vmatmul.mubr.bf16.gmra.mxu0 %v1535
          %v1641 = vpop.f32.mrf.mxu0
          %v1642 = vadd.f32 %v1557, %v1641
          %v1643 = vpop.f32.mrf.mxu0
          %v1644 = vpop.f32.mrf.mxu0
          %v1645 = vpop.f32.mrf.mxu0
          %1646 = vdwg.mxu0
          %v1647 = vmax.f32 %v1642, 0.0
          %1648 = vst [vmem:[#allocation3] sm:$0xff] %v1647
        $region148: #{tpu_custom_call.1} parent=91 // pred_fallthru
          _
        %p1649 = scmp.eq.s32.totalorder %s33, 4
        // Predicated region
        $region149: #{tpu_custom_call.1} parent=91 // pred_check
          %p1650 = pneg %p1649
        $region150: #{tpu_custom_call.1} parent=91 // pred_check_branch
          %1652 = sbr.rel (%p1650) target = $region152
        $region151: #{tpu_custom_call.1} parent=91 // pred_region
          %v1653 = vld [vmem:[#allocation8] sm:$0xf]
          %v1654 = vpack.c.bf16 %v1366, %v1363
          %v1656 = vsel %vm1021, %v1653, 0
          %1658 = vmatprep.subr.bf16.mxu0 0
          %1659 = vmatpush1.bf16.msra.mxu0 0
          %1660 = vmatprep.subr.bf16.mxu0 0
          %1661 = vmatpush1.bf16.msra.mxu0 0
          %1662 = vmatprep.subr.bf16.mxu0 0
          %1663 = vmatpush1.bf16.msra.mxu0 0
          %1664 = vmatprep.subr.bf16.mxu0 0
          %1665 = vmatpush1.bf16.msra.mxu0 0
          %1666 = vmatprep.subr.bf16.mxu0 0
          %1667 = vmatpush1.bf16.msra.mxu0 0
          %1668 = vmatprep.subr.bf16.mxu0 0
          %1669 = vmatpush1.bf16.msra.mxu0 0
          %1670 = vmatprep.subr.bf16.mxu0 0
          %1671 = vmatpush1.bf16.msra.mxu0 0
          %1672 = vmatprep.subr.bf16.mxu0 0
          %1673 = vmatpush1.bf16.msra.mxu0 %v1654
          %1674 = vmatprep.subr.bf16.mxu0 0
          %1675 = vmatpush2.bf16.msra.mxu0 0
          %1676 = vmatprep.subr.bf16.mxu0 0
          %1677 = vmatpush2.bf16.msra.mxu0 0
          %1678 = vmatprep.subr.bf16.mxu0 0
          %1679 = vmatpush2.bf16.msra.mxu0 0
          %1680 = vmatprep.subr.bf16.mxu0 0
          %1681 = vmatpush2.bf16.msra.mxu0 0
          %1682 = vmatprep.subr.bf16.mxu0 0
          %1683 = vmatpush2.bf16.msra.mxu0 0
          %1684 = vmatprep.subr.bf16.mxu0 0
          %1685 = vmatpush2.bf16.msra.mxu0 0
          %1686 = vmatprep.subr.bf16.mxu0 0
          %1687 = vmatpush2.bf16.msra.mxu0 0
          %1688 = vmatprep.subr.bf16.mxu0 0
          %1689 = vmatpush2.bf16.msra.mxu0 0
          %1690 = vmatprep.mubr.bf16.mxu0 0
          %1691 = vmatmul.mubr.bf16.gmra.mxu0 %v1656
          %v1692 = vpop.f32.mrf.mxu0
          %v1693 = vadd.f32 0.0, %v1692
          %v1694 = vpop.f32.mrf.mxu0
          %v1695 = vpop.f32.mrf.mxu0
          %v1696 = vpop.f32.mrf.mxu0
          %1697 = vdwg.mxu0
          %v1698 = vld [vmem:[%s3] sm:$0xff]
          %1700 = vset.pattern.permute.xlu0 0
          %1701 = vperm.xlu0 %1700, %v1698
          %v1702 = vpop.permute.xlu0 %1701
          %v1704 = vmul.f32 %v1693, %v1702
          %v1705 = vpack.c.bf16 %v1704, %v1704
          %v1706 = vld [vmem:[%s15] sm:$0xf]
          %v1707 = vld [vmem:[%s15 + $0x4] sm:$0xf]
          %v1708 = vld [vmem:[%s15 + $0x8] sm:$0xf]
          %v1709 = vld [vmem:[%s15 + $0xc] sm:$0xf]
          %v1710 = vld [vmem:[%s15 + $0x10] sm:$0xf]
          %v1711 = vld [vmem:[%s15 + $0x14] sm:$0xf]
          %v1712 = vld [vmem:[%s15 + $0x18] sm:$0xf]
          %v1713 = vld [vmem:[%s15 + $0x1c] sm:$0xf]
          %v1714 = vld [vmem:[%s15 + $0x20] sm:$0xf]
          %v1715 = vld [vmem:[%s15 + $0x24] sm:$0xf]
          %v1716 = vld [vmem:[%s15 + $0x28] sm:$0xf]
          %v1717 = vld [vmem:[%s15 + $0x2c] sm:$0xf]
          %v1718 = vld [vmem:[%s15 + $0x30] sm:$0xf]
          %v1719 = vld [vmem:[%s15 + $0x34] sm:$0xf]
          %v1720 = vld [vmem:[%s15 + $0x38] sm:$0xf]
          %v1721 = vld [vmem:[%s15 + $0x3c] sm:$0xf]
          %v1722 = vld [vmem:[%s16] sm:$0x1]
          %v1724 = vlaneseq
          %v1725 = vshrl.u32 %v1724, 7
          %v1726 = vsub.s32 0, %v1725
          %v1727 = vrot.slane %v1722, %v1726
          %v1745 = vunpack.c.l.b16 %v1706
          %v1746 = vunpack.c.l.b16 %v1707
          %v1747 = vunpack.c.l.b16 %v1708
          %v1748 = vunpack.c.l.b16 %v1709
          %v1749 = vunpack.c.l.b16 %v1710
          %v1750 = vunpack.c.l.b16 %v1711
          %v1751 = vunpack.c.l.b16 %v1712
          %v1752 = vunpack.c.l.b16 %v1713
          %v1753 = vunpack.c.l.b16 %v1714
          %v1754 = vunpack.c.l.b16 %v1715
          %v1755 = vunpack.c.l.b16 %v1716
          %v1756 = vunpack.c.l.b16 %v1717
          %v1757 = vunpack.c.l.b16 %v1718
          %v1758 = vunpack.c.l.b16 %v1719
          %v1759 = vunpack.c.l.b16 %v1720
          %v1760 = vunpack.c.l.b16 %v1721
          %v1761 = vpack.c.b16 %v1746, %v1745
          %v1762 = vpack.c.b16 %v1748, %v1747
          %v1763 = vpack.c.b16 %v1750, %v1749
          %v1764 = vpack.c.b16 %v1752, %v1751
          %v1765 = vpack.c.b16 %v1754, %v1753
          %v1766 = vpack.c.b16 %v1756, %v1755
          %v1767 = vpack.c.b16 %v1758, %v1757
          %v1768 = vpack.c.b16 %v1760, %v1759
          %1777 = vmatprep.subr.bf16.mxu0 0
          %1778 = vmatpush1.bf16.msra.mxu0 %v1768
          %1779 = vmatprep.subr.bf16.mxu0 0
          %1780 = vmatpush1.bf16.msra.mxu0 %v1767
          %1781 = vmatprep.subr.bf16.mxu0 0
          %1782 = vmatpush1.bf16.msra.mxu0 %v1766
          %1783 = vmatprep.subr.bf16.mxu0 0
          %1784 = vmatpush1.bf16.msra.mxu0 %v1765
          %1785 = vmatprep.subr.bf16.mxu0 0
          %1786 = vmatpush1.bf16.msra.mxu0 %v1764
          %1787 = vmatprep.subr.bf16.mxu0 0
          %1788 = vmatpush1.bf16.msra.mxu0 %v1763
          %1789 = vmatprep.subr.bf16.mxu0 0
          %1790 = vmatpush1.bf16.msra.mxu0 %v1762
          %1791 = vmatprep.subr.bf16.mxu0 0
          %1792 = vmatpush1.bf16.msra.mxu0 %v1761
          %1793 = vmatprep.subr.bf16.mxu0 0
          %1794 = vmatpush2.bf16.msra.mxu0 0
          %1795 = vmatprep.subr.bf16.mxu0 0
          %1796 = vmatpush2.bf16.msra.mxu0 0
          %1797 = vmatprep.subr.bf16.mxu0 0
          %1798 = vmatpush2.bf16.msra.mxu0 0
          %1799 = vmatprep.subr.bf16.mxu0 0
          %1800 = vmatpush2.bf16.msra.mxu0 0
          %1801 = vmatprep.subr.bf16.mxu0 0
          %1802 = vmatpush2.bf16.msra.mxu0 0
          %1803 = vmatprep.subr.bf16.mxu0 0
          %1804 = vmatpush2.bf16.msra.mxu0 0
          %1805 = vmatprep.subr.bf16.mxu0 0
          %1806 = vmatpush2.bf16.msra.mxu0 0
          %1807 = vmatprep.subr.bf16.mxu0 0
          %1808 = vmatpush2.bf16.msra.mxu0 0
          %1809 = vmatprep.mubr.bf16.mxu0 0
          %1810 = vmatmul.mubr.bf16.gmra.mxu0 %v1705
          %v1811 = vpop.f32.mrf.mxu0
          %v1812 = vadd.f32 %v1727, %v1811
          %v1813 = vpop.f32.mrf.mxu0
          %v1814 = vpop.f32.mrf.mxu0
          %v1815 = vpop.f32.mrf.mxu0
          %1816 = vdwg.mxu0
          %1817 = vst [vmem:[#allocation20] sm:$0xff] %v1812
        $region152: #{tpu_custom_call.1} parent=91 // pred_fallthru
          _
        // Predicated region
        $region153: #{tpu_custom_call.1} parent=91 // pred_check
          %p1818 = pneg %p485
        $region154: #{tpu_custom_call.1} parent=91 // pred_check_branch
          %1820 = sbr.rel (%p1818) target = $region156
        $region155: #{tpu_custom_call.1} parent=91 // pred_region
          %s1822 = ssub.s32 128, 128
          %1823 = vsyncadd [#allocation6], %s1822
          %s1825 = sshll.u32 [#allocation20], 4
          %s1826 = int_to_ptr.vmem [resolvable:$true] %s1825
          %1828 = dma.vmem_to_hbm [thread:$0]  %s1826, 128, %s18, [#allocation6]
        $region156: #{tpu_custom_call.1} parent=91 // pred_fallthru
          _
        // Predicated region
        $region157: #{tpu_custom_call.1} parent=91 // pred_check
          %p1829 = pneg %p485
        $region158: #{tpu_custom_call.1} parent=91 // pred_check_branch
          %1831 = sbr.rel (%p1829) target = $region160
        $region159: #{tpu_custom_call.1} parent=91 // pred_region
          %1832 = dma.done [#allocation6], 128
        $region160: #{tpu_custom_call.1} parent=91 // pred_fallthru
          _
      $region92: #{tpu_custom_call.1} parent=5 // pred_fallthru
        _
      %p1833 = scmp.le.s32.totalorder 2, %s28
      // Predicated region
      $region161: #{tpu_custom_call.1} parent=5 // pred_check
        %p1834 = pneg %p1833
      $region162: #{tpu_custom_call.1} parent=5 // pred_check_branch
        %1836 = sbr.rel (%p1834) target = $region164
      $region163: #{tpu_custom_call.1} parent=5 // pred_region
        %s1837 = ssub.s32 %s28, 2
      $region164: #{tpu_custom_call.1} parent=5 // pred_fallthru
        _
    $region6: #{tpu_custom_call.1} parent=1 // loop_footer
      %s32 = sadd.s32 1, %s28
    $region7: #{tpu_custom_call.1} parent=1 // loop_footer_branch
      %27 = sbr.rel target = $region3
    $region8: #{tpu_custom_call.1} parent=1 // loop_exit
      _
    %1838 = vsyncpa [#allocation5], 1
    %s1839 = scalar_lea.sflag [#allocation5], 1
    %1840 = vsyncpa %s1839, 1
    %1841 = vsyncpa [#allocation9], 1
    %1842 = vsyncpa [#allocation6], 1
    %s1843 = scalar_lea.sflag [#allocation6], 1
    %1844 = vsyncpa %s1843, 1
    %1845 = vsyncpa [#allocation7], 1
    %s1846 = scalar_lea.sflag [#allocation7], 1
    %1847 = vsyncpa %s1846, 1

</llo_original>
